<compile_context>
chip_gen: v6e
topology: v6e:2x2x1
jax: 0.10.0
libtpu: 0.0.40
codegen_flags: <defaults>
</compile_context>

<pallas_src>
import math
from functools import partial

import jax
import jax.numpy as jnp
from jax.experimental import pallas as pl
from jax.experimental.pallas import tpu as pltpu

_MIB = 1 << 20
_INV_SQRT2 = 1.0 / math.sqrt(2.0)
_SQRT_2_OVER_PI = math.sqrt(2.0 / math.pi)


def _gelu_exact(x):
    # matches torch.nn.GELU() default (erf based)
    return 0.5 * x * (1.0 + jax.lax.erf(x * _INV_SQRT2))


def _gelu_tanh(x):
    # optional EUP-friendly approximation (numerically != torch erf default)
    return 0.5 * x * (1.0 + jnp.tanh(_SQRT_2_OVER_PI * (x + 0.044715 * x * x * x)))


def _round_up(x, m):
    return (x + m - 1) // m * m


# ---------------------------------------------------------------------------
# Per-generation tiling / VMEM budgeting
# ---------------------------------------------------------------------------
def _device_vmem_capacity():
    try:
        info = pltpu.get_tpu_info()
        cap = int(getattr(info, "vmem_capacity_bytes", 0) or 0)
        if cap > 0:
            return cap
    except Exception:
        pass
    return 64 * _MIB          # conservative default sized for v7x


def _fused_vmem_bytes(tm, H, N, Bk, in_bytes, out_bytes, use_aaf):
    # The pipeline double-buffers EVERY input block, including the
    # constant-index weight blocks, so count those 2x as well.
    # TODO(synk): if/when pipeline_mode=pl.Buffered(1) is used for the constant
    # weight blocks, drop the 2x weight factor here.
    nbk = N * Bk
    nbk_n = nbk + N
    w_elems = H * nbk + 2 * H * H + H * nbk_n + nbk_n * H
    if use_aaf:
        w_elems += 2 * H * Bk
    weights = 2 * w_elems * 2                         # bf16, double-buffered
    biases = 2 * (nbk + H + (Bk + H if use_aaf else 0)) * 4
    tiles = 2 * tm * H * (in_bytes + out_bytes)       # token in/out tiles
    live = tm * (6 * H + 5 * nbk_n) * 4               # f32 intermediates headroom
    return weights + biases + tiles + live + 4 * _MIB


def _adapter_vmem_bytes(tm, H, Bk, in_bytes, out_bytes):
    weights = 2 * (2 * H * Bk) * 2 + 2 * (Bk + H) * 4
    tiles = 2 * tm * H * (in_bytes + out_bytes)
    live = tm * (2 * H + 3 * Bk) * 4
    return weights + tiles + live + 2 * _MIB


def _pick_tm(M, est_fn, cap, *, big_target, small_target, tm=None):
    """Pick token-tile size + scoped VMEM limit for the current TPU generation."""
    budget = min(int(cap * 0.85), 100 * _MIB)   # ~100 MiB on v5e/v6e, ~54 MiB on v7x
    if tm is None:
        target = big_target if cap >= 96 * _MIB else small_target
        tm = min(target, _round_up(max(M, 16), 16))
    tm = max(16, _round_up(int(tm), 16))
    while tm > 16 and est_fn(tm) > budget:
        tm = max(16, _round_up(tm // 2, 16))
    # Guarantee >= 2 grid steps for small M so a 2-TensorCore chip (v7x) can
    # shard the "parallel" token axis instead of idling one core.
    if M > 16 and pl.cdiv(M, tm) < 2:
        tm = max(16, _round_up(pl.cdiv(M, 2), 16))
    vmem_limit = int(min(max(est_fn(tm), 16 * _MIB), budget))
    return tm, vmem_limit


# ---------------------------------------------------------------------------
# Fused stage-2 kernel: adapter bank + fusion attention (+ adapter-after-fusion)
# One grid step = one tile of tm token rows; weights stay VMEM-resident.
# ---------------------------------------------------------------------------
def _fused_kernel(x_ref, wd_ref, bd_ref, wqk_ref, bqk_ref, wsc_ref, wua_ref,
                  wv_ref, *rest, n_adapters, bottleneck,
                  use_adapter_after_fusion, gelu_approx):
    if use_adapter_after_fusion:
        awd_ref, abd_ref, awu_ref, abu_ref, out_ref = rest
    else:
        (out_ref,) = rest

    N, Bk = n_adapters, bottleneck
    gelu = _gelu_tanh if gelu_approx else _gelu_exact

    x = x_ref[...]
    x_bf = x.astype(jnp.bfloat16)        # MXU inputs in bf16
    x32 = x.astype(jnp.float32)          # elementwise math in f32

    # (1) all N adapter down-projections as one lane-dense matmul (K = H)
    down = jnp.dot(x_bf, wd_ref[...], preferred_element_type=jnp.float32) + bd_ref[...]
    h_all = gelu(down)                                                # (tm, N*Bk) f32

    # (2) folded query/key projection: qk = x @ (Wq Wk^T) + bq Wk^T
    #     (key bias bk and the qk.x term are adapter-independent -> cancel in softmax)
    qk = jnp.dot(x_bf, wqk_ref[...], preferred_element_type=jnp.float32) + bqk_ref[...]
    qk_bf = qk.astype(jnp.bfloat16)

    # (3) one matmul gives both the per-adapter score projections and biases:
    #     qs[:, n*Bk:(n+1)*Bk] = qk @ Wu_n^T ,  qs[:, N*Bk + n] = qk . bu_n
    qs = jnp.dot(qk_bf, wsc_ref[...], preferred_element_type=jnp.float32)  # (tm, N*Bk+N)

    # (4) scores + plain softmax over the (tiny) adapter axis (T == 1, eval dropout)
    prod = h_all * qs[:, :N * Bk]
    cols = [jnp.sum(prod[:, n * Bk:(n + 1) * Bk], axis=1, keepdims=True)
            for n in range(N)]
    scores = jnp.concatenate(cols, axis=1) + qs[:, N * Bk:]                # (tm, N)
    m = jnp.max(scores, axis=1, keepdims=True)
    e = jnp.exp(scores - m)
    p = e / jnp.sum(e, axis=1, keepdims=True)                              # (tm, N)

    # (5) softmax-weighted K/V mix as ONE batched matmul (K = N*Bk + N):
    #     ctx_kv = sum_n p_n (h_n @ Wu_n + bu_n + x)
    #            = [p_1*h_1 .. p_N*h_N | p] @ [Wu_1;..;Wu_N;bu] + x   (sum_n p_n = 1)
    pieces = [h_all[:, n * Bk:(n + 1) * Bk] * p[:, n:n + 1] for n in range(N)]
    h_aug = jnp.concatenate(pieces + [p], axis=1).astype(jnp.bfloat16)
    ctx_kv = jnp.dot(h_aug, wua_ref[...], preferred_element_type=jnp.float32) + x32

    # (6) value projection (Wv, no bias)
    ctx = jnp.dot(ctx_kv.astype(jnp.bfloat16), wv_ref[...],
                  preferred_element_type=jnp.float32)

    if use_adapter_after_fusion:
        d = jnp.dot(ctx.astype(jnp.bfloat16), awd_ref[...],
                    preferred_element_type=jnp.float32) + abd_ref[...]
        g = gelu(d).astype(jnp.bfloat16)
        ctx = jnp.dot(g, awu_ref[...], preferred_element_type=jnp.float32) + abu_ref[...]

    out_ref[...] = ctx.astype(out_ref.dtype)


def _fused_call(x2d, prepped, *, tm, out_dtype, vmem_limit, gelu_approx):
    M, H = x2d.shape
    N, Bk = prepped["n_adapters"], prepped["bottleneck"]
    use_aaf = prepped["use_adapter_after_fusion"]

    def _const(a):                       # constant block index -> VMEM-resident weight
        return pl.BlockSpec(a.shape, lambda i: (0, 0))

    weight_names = ["wd_all", "bd_all", "wqk", "bqk", "wscore", "wu_aug", "wv"]
    if use_aaf:
        weight_names += ["awd", "abd", "awu", "abu"]
    weights = [prepped[k] for k in weight_names]

    kern = partial(_fused_kernel, n_adapters=N, bottleneck=Bk,
                   use_adapter_after_fusion=use_aaf, gelu_approx=gelu_approx)
    return pl.pallas_call(
        kern,
        out_shape=jax.ShapeDtypeStruct((M, H), out_dtype),
        grid=(pl.cdiv(M, tm),),
        in_specs=[pl.BlockSpec((tm, H), lambda i: (i, 0))]
                 + [_const(w) for w in weights],
        out_specs=pl.BlockSpec((tm, H), lambda i: (i, 0)),
        compiler_params=pltpu.CompilerParams(
            dimension_semantics=("parallel",),
            vmem_limit_bytes=vmem_limit),
    )(x2d, *weights)


# ---------------------------------------------------------------------------
# Stage-1 kernel: single adapter module, tiled over tokens (memory-bound).
# ---------------------------------------------------------------------------
def _adapter_kernel(x_ref, wd_ref, bd_ref, wu_ref, bu_ref, out_ref, *, gelu_approx):
    gelu = _gelu_tanh if gelu_approx else _gelu_exact
    x_bf = x_ref[...].astype(jnp.bfloat16)
    d = jnp.dot(x_bf, wd_ref[...], preferred_element_type=jnp.float32) + bd_ref[...]
    h = gelu(d).astype(jnp.bfloat16)
    out = jnp.dot(h, wu_ref[...], preferred_element_type=jnp.float32) + bu_ref[...]
    out_ref[...] = out.astype(out_ref.dtype)


def _adapter_call(x2d, wd, bd, wu, bu, *, tm, out_dtype, vmem_limit, gelu_approx):
    M, H = x2d.shape
    Bk = wd.shape[1]
    const2 = lambda i: (0, 0)
    kern = partial(_adapter_kernel, gelu_approx=gelu_approx)
    return pl.pallas_call(
        kern,
        out_shape=jax.ShapeDtypeStruct((M, H), out_dtype),
        grid=(pl.cdiv(M, tm),),
        in_specs=[pl.BlockSpec((tm, H), lambda i: (i, 0)),
                  pl.BlockSpec((H, Bk), const2),
                  pl.BlockSpec((1, Bk), const2),
                  pl.BlockSpec((Bk, H), const2),
                  pl.BlockSpec((1, H), const2)],
        out_specs=pl.BlockSpec((tm, H), lambda i: (i, 0)),
        compiler_params=pltpu.CompilerParams(
            dimension_semantics=("parallel",),
            vmem_limit_bytes=vmem_limit),
    )(x2d, wd.astype(jnp.bfloat16), bd.reshape(1, Bk).astype(jnp.float32),
      wu.astype(jnp.bfloat16), bu.reshape(1, H).astype(jnp.float32))


# ---------------------------------------------------------------------------
# One-time weight preparation (hoisted out of the forward path)
# ---------------------------------------------------------------------------
def prepare_fusion_params(p, *, use_adapter_after_fusion=True):
    wd = p["adapters_wd"]                                   # (N, H, Bk)
    N, H, Bk = wd.shape
    wu = p["adapters_wu"].astype(jnp.float32)               # (N, Bk, H)
    bu = p["adapters_bu"].astype(jnp.float32)               # (N, H)

    wd_all = jnp.transpose(wd, (1, 0, 2)).reshape(H, N * Bk).astype(jnp.bfloat16)
    bd_all = p["adapters_bd"].reshape(1, N * Bk).astype(jnp.float32)

    wk = p["wk"].astype(jnp.float32)
    wqk = (p["wq"].astype(jnp.float32) @ wk.T).astype(jnp.bfloat16)       # Wq Wk^T
    bqk = (p["bq"].astype(jnp.float32).reshape(1, H) @ wk.T).astype(jnp.float32)
    # key bias p["bk"] cancels in the softmax -> intentionally unused.

    wuT_all = jnp.transpose(wu, (2, 0, 1)).reshape(H, N * Bk)             # [Wu_n^T] cols
    wscore = jnp.concatenate([wuT_all, bu.T], axis=1).astype(jnp.bfloat16)   # (H, N*Bk+N)
    wu_aug = jnp.concatenate([wu.reshape(N * Bk, H), bu], axis=0).astype(jnp.bfloat16)

    prepped = dict(n_adapters=N, bottleneck=Bk, hidden=H,
                   use_adapter_after_fusion=use_adapter_after_fusion,
                   wd_all=wd_all, bd_all=bd_all, wqk=wqk, bqk=bqk,
                   wscore=wscore, wu_aug=wu_aug,
                   wv=p["wv"].astype(jnp.bfloat16))
    if use_adapter_after_fusion:
        prepped.update(awd=p["ad_wd"].astype(jnp.bfloat16),
                       abd=p["ad_bd"].reshape(1, Bk).astype(jnp.float32),
                       awu=p["ad_wu"].astype(jnp.bfloat16),
                       abu=p["ad_bu"].reshape(1, H).astype(jnp.float32))
    return prepped


# ---------------------------------------------------------------------------
# Module-level wrapper (forward of AdapterFusionModule)
# ---------------------------------------------------------------------------
def _fusion_forward(hidden_states, prepped, *, tm, out_dtype, gelu_approx):
    B, S, H = hidden_states.shape
    M = B * S
    x2d = hidden_states.reshape(M, H)
    cap = _device_vmem_capacity()
    in_b = jnp.dtype(hidden_states.dtype).itemsize
    out_b = jnp.dtype(out_dtype).itemsize
    N, Bk = prepped["n_adapters"], prepped["bottleneck"]
    est = lambda t: _fused_vmem_bytes(t, H, N, Bk, in_b, out_b,
                                      prepped["use_adapter_after_fusion"])
    tm_sel, vmem_limit = _pick_tm(M, est, cap, big_target=512, small_target=256, tm=tm)
    out = _fused_call(x2d, prepped, tm=tm_sel, out_dtype=out_dtype,
                      vmem_limit=vmem_limit, gelu_approx=gelu_approx)
    return out.reshape(B, S, H)


def _adapter_forward(hidden_states, wd, bd, wu, bu, *, tm, out_dtype, gelu_approx):
    B, S, H = hidden_states.shape
    M = B * S
    x2d = hidden_states.reshape(M, H)
    cap = _device_vmem_capacity()
    in_b = jnp.dtype(hidden_states.dtype).itemsize
    out_b = jnp.dtype(out_dtype).itemsize
    Bk = wd.shape[1]
    est = lambda t: _adapter_vmem_bytes(t, H, Bk, in_b, out_b)
    tm_sel, vmem_limit = _pick_tm(M, est, cap, big_target=1024, small_target=512, tm=tm)
    out = _adapter_call(x2d, wd, bd, wu, bu, tm=tm_sel, out_dtype=out_dtype,
                        vmem_limit=vmem_limit, gelu_approx=gelu_approx)
    return out.reshape(B, S, H)


def adapter_fusion_forward(hidden_states, params=None, *, stage_2_training=True,
                           adapter_to_train_index=0, use_adapt_after_fusion=True,
                           prepared=None, tm=None, out_dtype=jnp.bfloat16,
                           gelu_approx=False, attention_mask=None):
    # attention_mask is accepted for signature parity; FusionAttn never uses it.
    del attention_mask
    if not stage_2_training:
        i = adapter_to_train_index
        return _adapter_forward(hidden_states,
                                params["adapters_wd"][i], params["adapters_bd"][i],
                                params["adapters_wu"][i], params["adapters_bu"][i],
                                tm=tm, out_dtype=out_dtype, gelu_approx=gelu_approx)
    if prepared is None:   # slow path; prefer prepare_fusion_params() once + reuse
        prepared = prepare_fusion_params(params,
                                         use_adapter_after_fusion=use_adapt_after_fusion)
    return _fusion_forward(hidden_states, prepared, tm=tm, out_dtype=out_dtype,
                           gelu_approx=gelu_approx)


# ---------------------------------------------------------------------------
# Pure-JAX f32 reference mirroring the PyTorch code (incl. key/value alias)
# ---------------------------------------------------------------------------
def reference_forward(hidden_states, p, *, use_adapt_after_fusion=True):
    def adapter(x, wd, bd, wu, bu):
        return _gelu_exact(x @ wd + bd) @ wu + bu

    N = p["adapters_wd"].shape[0]
    outs = [adapter(hidden_states, p["adapters_wd"][n], p["adapters_bd"][n],
                    p["adapters_wu"][n], p["adapters_bu"][n]) for n in range(N)]
    adapters_output = jnp.stack(outs)                         # (N, B, S, H)

    kv = jnp.transpose(adapters_output, (2, 1, 0, 3))         # (S, B, N, H)
    residual = jnp.transpose(hidden_states, (1, 0, 2))        # (S, B, H)
    kv = kv + residual[:, :, None, :]                         # aliased key & value

    q = residual @ p["wq"] + p["bq"]
    k = kv @ p["wk"] + p["bk"]
    v = kv @ p["wv"]

    scores = jnp.einsum("sbh,sbnh->sbn", q, k)                # T == 1, dropout=eval
    probs = jax.nn.softmax(scores, axis=-1)
    ctx = jnp.einsum("sbn,sbnh->sbh", probs, v)
    ctx = jnp.transpose(ctx, (1, 0, 2))                       # (B, S, H)
    if use_adapt_after_fusion:
        ctx = adapter(ctx, p["ad_wd"], p["ad_bd"], p["ad_wu"], p["ad_bu"])
    return ctx


def make_params(key, hidden_size, n_adapters, bottleneck=64):
    ks = jax.random.split(key, 16)
    s = 0.02
    H, Bk, N = hidden_size, bottleneck, n_adapters
    return {
        "adapters_wd": jax.random.normal(ks[0], (N, H, Bk), jnp.float32) * s,
        "adapters_bd": jax.random.normal(ks[1], (N, Bk), jnp.float32) * s,
        "adapters_wu": jax.random.normal(ks[2], (N, Bk, H), jnp.float32) * s,
        "adapters_bu": jax.random.normal(ks[3], (N, H), jnp.float32) * s,
        "wq": jax.random.normal(ks[4], (H, H), jnp.float32) * s,
        "bq": jax.random.normal(ks[5], (1, H), jnp.float32) * s,
        "wk": jax.random.normal(ks[6], (H, H), jnp.float32) * s,
        "bk": jax.random.normal(ks[7], (1, H), jnp.float32) * s,
        "wv": jax.random.normal(ks[8], (H, H), jnp.float32) * s,   # no bias
        "ad_wd": jax.random.normal(ks[9], (H, Bk), jnp.float32) * s,
        "ad_bd": jax.random.normal(ks[10], (1, Bk), jnp.float32) * s,
        "ad_wu": jax.random.normal(ks[11], (Bk, H), jnp.float32) * s,
        "ad_bu": jax.random.normal(ks[12], (1, H), jnp.float32) * s,
    }


if __name__ == "__main__":
    B, S, H = 2, 16, 32
    N_ADAPTERS = 3
    key = jax.random.PRNGKey(0)
    k_x, k_p = jax.random.split(key)
    hidden_states = jax.random.normal(k_x, (B, S, H), jnp.float32)
    params = make_params(k_p, H, N_ADAPTERS, bottleneck=64)

    # Weight reformatting / Wq.Wk^T fold hoisted out of the forward path.
    prepared = prepare_fusion_params(params, use_adapter_after_fusion=True)

    # stage-2 (fusion) path, bf16 output; auto tm picks 16 -> 2 grid steps here.
    out = adapter_fusion_forward(hidden_states, params, stage_2_training=True,
                                 prepared=prepared, out_dtype=jnp.bfloat16)
    out = jax.block_until_ready(out)
    ref = reference_forward(hidden_states, params, use_adapt_after_fusion=True)
    assert out.shape == (B, S, H) and out.dtype == jnp.bfloat16
    err = float(jnp.max(jnp.abs(out.astype(jnp.float32) - ref)))
    assert jnp.allclose(out.astype(jnp.float32), ref, atol=5e-3, rtol=5e-2), err

    # fusion path without the adapter-after-fusion block (f32 output)
    prepared_nof = prepare_fusion_params(params, use_adapter_after_fusion=False)
    out_nof = jax.block_until_ready(
        adapter_fusion_forward(hidden_states, params, stage_2_training=True,
                               use_adapt_after_fusion=False, prepared=prepared_nof,
                               out_dtype=jnp.float32))
    ref_nof = reference_forward(hidden_states, params, use_adapt_after_fusion=False)
    err_nof = float(jnp.max(jnp.abs(out_nof - ref_nof)))
    assert jnp.allclose(out_nof, ref_nof, atol=5e-3, rtol=5e-2), err_nof

    # stage-1 (single-adapter) path
    out1 = jax.block_until_ready(
        adapter_fusion_forward(hidden_states, params, stage_2_training=False,
                               adapter_to_train_index=1, out_dtype=jnp.float32))
    ref1 = (_gelu_exact(hidden_states @ params["adapters_wd"][1] + params["adapters_bd"][1])
            @ params["adapters_wu"][1] + params["adapters_bu"][1])
    err1 = float(jnp.max(jnp.abs(out1 - ref1)))
    assert jnp.allclose(out1, ref1, atol=3e-3, rtol=3e-2), err1

    # TODO(synk): nn.Dropout layers and the FusionAttn T-annealing (self.T mutation)
    # are training-time state/noise; identity for a single eval forward, not modeled.
    print("KERNEL_OK")
</pallas_src>

<mosaic_0001>
module attributes {stable_mosaic.version = 11 : i64} {
  func.func @_fused_kernel(%arg0: i32, %arg1: memref<16x32xf32, #tpu.memory_space<vmem>>, %arg2: memref<32x192xbf16, #tpu.memory_space<vmem>>, %arg3: memref<1x192xf32, #tpu.memory_space<vmem>>, %arg4: memref<32x32xbf16, #tpu.memory_space<vmem>>, %arg5: memref<1x32xf32, #tpu.memory_space<vmem>>, %arg6: memref<32x195xbf16, #tpu.memory_space<vmem>>, %arg7: memref<195x32xbf16, #tpu.memory_space<vmem>>, %arg8: memref<32x32xbf16, #tpu.memory_space<vmem>>, %arg9: memref<32x64xbf16, #tpu.memory_space<vmem>>, %arg10: memref<1x64xf32, #tpu.memory_space<vmem>>, %arg11: memref<64x32xbf16, #tpu.memory_space<vmem>>, %arg12: memref<1x32xf32, #tpu.memory_space<vmem>>, %arg13: memref<16x32xbf16, #tpu.memory_space<vmem>>) attributes {dimension_semantics = [#tpu.dimension_semantics<parallel>], iteration_bounds = array<i64: 2>, scalar_prefetch = 0 : i64, scratch_operands = 0 : i64, tpu.core_type = #tpu.core_type<tc>, window_params = [{transform_indices = @transform_0, window_bounds = array<i64: 16, 32>}, {pipeline_mode = #tpu.pipeline_mode<synchronous>, transform_indices = @transform_1, window_bounds = array<i64: 32, 192>}, {pipeline_mode = #tpu.pipeline_mode<synchronous>, transform_indices = @transform_2, window_bounds = array<i64: 1, 192>}, {pipeline_mode = #tpu.pipeline_mode<synchronous>, transform_indices = @transform_3, window_bounds = array<i64: 32, 32>}, {pipeline_mode = #tpu.pipeline_mode<synchronous>, transform_indices = @transform_4, window_bounds = array<i64: 1, 32>}, {pipeline_mode = #tpu.pipeline_mode<synchronous>, transform_indices = @transform_5, window_bounds = array<i64: 32, 195>}, {pipeline_mode = #tpu.pipeline_mode<synchronous>, transform_indices = @transform_6, window_bounds = array<i64: 195, 32>}, {pipeline_mode = #tpu.pipeline_mode<synchronous>, transform_indices = @transform_7, window_bounds = array<i64: 32, 32>}, {pipeline_mode = #tpu.pipeline_mode<synchronous>, transform_indices = @transform_8, window_bounds = array<i64: 32, 64>}, {pipeline_mode = #tpu.pipeline_mode<synchronous>, transform_indices = @transform_9, window_bounds = array<i64: 1, 64>}, {pipeline_mode = #tpu.pipeline_mode<synchronous>, transform_indices = @transform_10, window_bounds = array<i64: 64, 32>}, {pipeline_mode = #tpu.pipeline_mode<synchronous>, transform_indices = @transform_11, window_bounds = array<i64: 1, 32>}, {transform_indices = @transform_12, window_bounds = array<i64: 16, 32>}]} {
    %c0 = arith.constant 0 : index
    %c0_0 = arith.constant 0 : index
    %0 = vector.load %arg1[%c0, %c0_0] : memref<16x32xf32, #tpu.memory_space<vmem>>, vector<16x32xf32>
    %1 = arith.truncf %0 : vector<16x32xf32> to vector<16x32xbf16>
    %c0_1 = arith.constant 0 : index
    %c0_2 = arith.constant 0 : index
    %2 = vector.load %arg2[%c0_1, %c0_2] : memref<32x192xbf16, #tpu.memory_space<vmem>>, vector<32x192xbf16>
    %cst = arith.constant dense<0.000000e+00> : vector<16x192xf32>
    %3 = tpu.matmul %1, %2, %cst {dimension_numbers = #tpu.dot_dimension_numbers<[1], [0], [0], [1], [0, 0, 1, 1], [], []>} : vector<16x32xbf16>, vector<32x192xbf16>, vector<16x192xf32> -> vector<16x192xf32>
    %c0_3 = arith.constant 0 : index
    %c0_4 = arith.constant 0 : index
    %4 = vector.load %arg3[%c0_3, %c0_4] : memref<1x192xf32, #tpu.memory_space<vmem>>, vector<1x192xf32>
    %5 = vector.broadcast %4 : vector<1x192xf32> to vector<16x192xf32>
    %6 = arith.addf %3, %5 : vector<16x192xf32>
    %cst_5 = arith.constant 5.000000e-01 : f32
    %7 = vector.broadcast %cst_5 : f32 to vector<16x192xf32>
    %8 = arith.mulf %7, %6 : vector<16x192xf32>
    %cst_6 = arith.constant 0.707106769 : f32
    %9 = vector.broadcast %cst_6 : f32 to vector<16x192xf32>
    %10 = arith.mulf %6, %9 : vector<16x192xf32>
    %11 = math.erf %10 : vector<16x192xf32>
    %cst_7 = arith.constant 1.000000e+00 : f32
    %12 = vector.broadcast %cst_7 : f32 to vector<16x192xf32>
    %13 = arith.addf %12, %11 : vector<16x192xf32>
    %14 = arith.mulf %8, %13 : vector<16x192xf32>
    %c0_8 = arith.constant 0 : index
    %c0_9 = arith.constant 0 : index
    %15 = vector.load %arg4[%c0_8, %c0_9] : memref<32x32xbf16, #tpu.memory_space<vmem>>, vector<32x32xbf16>
    %cst_10 = arith.constant dense<0.000000e+00> : vector<16x32xf32>
    %16 = tpu.matmul %1, %15, %cst_10 {dimension_numbers = #tpu.dot_dimension_numbers<[1], [0], [0], [1], [0, 0, 1, 1], [], []>} : vector<16x32xbf16>, vector<32x32xbf16>, vector<16x32xf32> -> vector<16x32xf32>
    %c0_11 = arith.constant 0 : index
    %c0_12 = arith.constant 0 : index
    %17 = vector.load %arg5[%c0_11, %c0_12] : memref<1x32xf32, #tpu.memory_space<vmem>>, vector<1x32xf32>
    %18 = vector.broadcast %17 : vector<1x32xf32> to vector<16x32xf32>
    %19 = arith.addf %16, %18 : vector<16x32xf32>
    %20 = arith.truncf %19 : vector<16x32xf32> to vector<16x32xbf16>
    %c0_13 = arith.constant 0 : index
    %c0_14 = arith.constant 0 : index
    %21 = vector.load %arg6[%c0_13, %c0_14] : memref<32x195xbf16, #tpu.memory_space<vmem>>, vector<32x195xbf16>
    %cst_15 = arith.constant dense<0.000000e+00> : vector<16x195xf32>
    %22 = tpu.matmul %20, %21, %cst_15 {dimension_numbers = #tpu.dot_dimension_numbers<[1], [0], [0], [1], [0, 0, 1, 1], [], []>} : vector<16x32xbf16>, vector<32x195xbf16>, vector<16x195xf32> -> vector<16x195xf32>
    %23 = vector.extract_strided_slice %22 {offsets = [0, 0], sizes = [16, 192], strides = [1, 1]} : vector<16x195xf32> to vector<16x192xf32>
    %24 = arith.mulf %14, %23 : vector<16x192xf32>
    %25 = vector.extract_strided_slice %24 {offsets = [0, 0], sizes = [16, 64], strides = [1, 1]} : vector<16x192xf32> to vector<16x64xf32>
    %cst_16 = arith.constant dense<0.000000e+00> : vector<16xf32>
    %26 = vector.multi_reduction <add>, %25, %cst_16 [1] : vector<16x64xf32> to vector<16xf32>
    %27 = vector.shape_cast %26 : vector<16xf32> to vector<16x1xf32>
    %28 = vector.extract_strided_slice %24 {offsets = [0, 64], sizes = [16, 64], strides = [1, 1]} : vector<16x192xf32> to vector<16x64xf32>
    %cst_17 = arith.constant dense<0.000000e+00> : vector<16xf32>
    %29 = vector.multi_reduction <add>, %28, %cst_17 [1] : vector<16x64xf32> to vector<16xf32>
    %30 = vector.shape_cast %29 : vector<16xf32> to vector<16x1xf32>
    %31 = vector.extract_strided_slice %24 {offsets = [0, 128], sizes = [16, 64], strides = [1, 1]} : vector<16x192xf32> to vector<16x64xf32>
    %cst_18 = arith.constant dense<0.000000e+00> : vector<16xf32>
    %32 = vector.multi_reduction <add>, %31, %cst_18 [1] : vector<16x64xf32> to vector<16xf32>
    %33 = vector.shape_cast %32 : vector<16xf32> to vector<16x1xf32>
    %34 = tpu.concatenate %27, %30, %33 in 1 : vector<16x1xf32>, vector<16x1xf32>, vector<16x1xf32> -> vector<16x3xf32>
    %35 = vector.extract_strided_slice %22 {offsets = [0, 192], sizes = [16, 3], strides = [1, 1]} : vector<16x195xf32> to vector<16x3xf32>
    %36 = arith.addf %34, %35 : vector<16x3xf32>
    %cst_19 = arith.constant dense<0xFF800000> : vector<16xf32>
    %37 = vector.multi_reduction <maximumf>, %36, %cst_19 [1] : vector<16x3xf32> to vector<16xf32>
    %38 = vector.shape_cast %37 : vector<16xf32> to vector<16x1xf32>
    %39 = vector.broadcast %38 : vector<16x1xf32> to vector<16x3xf32>
    %40 = arith.subf %36, %39 : vector<16x3xf32>
    %41 = math.exp %40 : vector<16x3xf32>
    %cst_20 = arith.constant dense<0.000000e+00> : vector<16xf32>
    %42 = vector.multi_reduction <add>, %41, %cst_20 [1] : vector<16x3xf32> to vector<16xf32>
    %43 = vector.shape_cast %42 : vector<16xf32> to vector<16x1xf32>
    %44 = vector.broadcast %43 : vector<16x1xf32> to vector<16x3xf32>
    %45 = arith.divf %41, %44 : vector<16x3xf32>
    %46 = vector.extract_strided_slice %14 {offsets = [0, 0], sizes = [16, 64], strides = [1, 1]} : vector<16x192xf32> to vector<16x64xf32>
    %47 = vector.extract_strided_slice %45 {offsets = [0, 0], sizes = [16, 1], strides = [1, 1]} : vector<16x3xf32> to vector<16x1xf32>
    %48 = vector.broadcast %47 : vector<16x1xf32> to vector<16x64xf32>
    %49 = arith.mulf %46, %48 : vector<16x64xf32>
    %50 = vector.extract_strided_slice %14 {offsets = [0, 64], sizes = [16, 64], strides = [1, 1]} : vector<16x192xf32> to vector<16x64xf32>
    %51 = vector.extract_strided_slice %45 {offsets = [0, 1], sizes = [16, 1], strides = [1, 1]} : vector<16x3xf32> to vector<16x1xf32>
    %52 = vector.broadcast %51 : vector<16x1xf32> to vector<16x64xf32>
    %53 = arith.mulf %50, %52 : vector<16x64xf32>
    %54 = vector.extract_strided_slice %14 {offsets = [0, 128], sizes = [16, 64], strides = [1, 1]} : vector<16x192xf32> to vector<16x64xf32>
    %55 = vector.extract_strided_slice %45 {offsets = [0, 2], sizes = [16, 1], strides = [1, 1]} : vector<16x3xf32> to vector<16x1xf32>
    %56 = vector.broadcast %55 : vector<16x1xf32> to vector<16x64xf32>
    %57 = arith.mulf %54, %56 : vector<16x64xf32>
    %58 = tpu.concatenate %49, %53, %57, %45 in 1 : vector<16x64xf32>, vector<16x64xf32>, vector<16x64xf32>, vector<16x3xf32> -> vector<16x195xf32>
    %59 = arith.truncf %58 : vector<16x195xf32> to vector<16x195xbf16>
    %c0_21 = arith.constant 0 : index
    %c0_22 = arith.constant 0 : index
    %60 = vector.load %arg7[%c0_21, %c0_22] : memref<195x32xbf16, #tpu.memory_space<vmem>>, vector<195x32xbf16>
    %cst_23 = arith.constant dense<0.000000e+00> : vector<16x32xf32>
    %61 = tpu.matmul %59, %60, %cst_23 {dimension_numbers = #tpu.dot_dimension_numbers<[1], [0], [0], [1], [0, 0, 1, 1], [], []>} : vector<16x195xbf16>, vector<195x32xbf16>, vector<16x32xf32> -> vector<16x32xf32>
    %62 = arith.addf %61, %0 : vector<16x32xf32>
    %63 = arith.truncf %62 : vector<16x32xf32> to vector<16x32xbf16>
    %c0_24 = arith.constant 0 : index
    %c0_25 = arith.constant 0 : index
    %64 = vector.load %arg8[%c0_24, %c0_25] : memref<32x32xbf16, #tpu.memory_space<vmem>>, vector<32x32xbf16>
    %cst_26 = arith.constant dense<0.000000e+00> : vector<16x32xf32>
    %65 = tpu.matmul %63, %64, %cst_26 {dimension_numbers = #tpu.dot_dimension_numbers<[1], [0], [0], [1], [0, 0, 1, 1], [], []>} : vector<16x32xbf16>, vector<32x32xbf16>, vector<16x32xf32> -> vector<16x32xf32>
    %66 = arith.truncf %65 : vector<16x32xf32> to vector<16x32xbf16>
    %c0_27 = arith.constant 0 : index
    %c0_28 = arith.constant 0 : index
    %67 = vector.load %arg9[%c0_27, %c0_28] : memref<32x64xbf16, #tpu.memory_space<vmem>>, vector<32x64xbf16>
    %cst_29 = arith.constant dense<0.000000e+00> : vector<16x64xf32>
    %68 = tpu.matmul %66, %67, %cst_29 {dimension_numbers = #tpu.dot_dimension_numbers<[1], [0], [0], [1], [0, 0, 1, 1], [], []>} : vector<16x32xbf16>, vector<32x64xbf16>, vector<16x64xf32> -> vector<16x64xf32>
    %c0_30 = arith.constant 0 : index
    %c0_31 = arith.constant 0 : index
    %69 = vector.load %arg10[%c0_30, %c0_31] : memref<1x64xf32, #tpu.memory_space<vmem>>, vector<1x64xf32>
    %70 = vector.broadcast %69 : vector<1x64xf32> to vector<16x64xf32>
    %71 = arith.addf %68, %70 : vector<16x64xf32>
    %cst_32 = arith.constant 5.000000e-01 : f32
    %72 = vector.broadcast %cst_32 : f32 to vector<16x64xf32>
    %73 = arith.mulf %72, %71 : vector<16x64xf32>
    %cst_33 = arith.constant 0.707106769 : f32
    %74 = vector.broadcast %cst_33 : f32 to vector<16x64xf32>
    %75 = arith.mulf %71, %74 : vector<16x64xf32>
    %76 = math.erf %75 : vector<16x64xf32>
    %cst_34 = arith.constant 1.000000e+00 : f32
    %77 = vector.broadcast %cst_34 : f32 to vector<16x64xf32>
    %78 = arith.addf %77, %76 : vector<16x64xf32>
    %79 = arith.mulf %73, %78 : vector<16x64xf32>
    %80 = arith.truncf %79 : vector<16x64xf32> to vector<16x64xbf16>
    %c0_35 = arith.constant 0 : index
    %c0_36 = arith.constant 0 : index
    %81 = vector.load %arg11[%c0_35, %c0_36] : memref<64x32xbf16, #tpu.memory_space<vmem>>, vector<64x32xbf16>
    %cst_37 = arith.constant dense<0.000000e+00> : vector<16x32xf32>
    %82 = tpu.matmul %80, %81, %cst_37 {dimension_numbers = #tpu.dot_dimension_numbers<[1], [0], [0], [1], [0, 0, 1, 1], [], []>} : vector<16x64xbf16>, vector<64x32xbf16>, vector<16x32xf32> -> vector<16x32xf32>
    %c0_38 = arith.constant 0 : index
    %c0_39 = arith.constant 0 : index
    %83 = vector.load %arg12[%c0_38, %c0_39] : memref<1x32xf32, #tpu.memory_space<vmem>>, vector<1x32xf32>
    %84 = vector.broadcast %83 : vector<1x32xf32> to vector<16x32xf32>
    %85 = arith.addf %82, %84 : vector<16x32xf32>
    %86 = arith.truncf %85 : vector<16x32xf32> to vector<16x32xbf16>
    %c0_40 = arith.constant 0 : index
    %c0_41 = arith.constant 0 : index
    %87 = vector.load %arg13[%c0_40, %c0_41] : memref<16x32xbf16, #tpu.memory_space<vmem>>, vector<16x32xbf16>
    tpu.vector_store %arg13[%c0_40, %c0_41], %86 {strides = array<i32>} : memref<16x32xbf16, #tpu.memory_space<vmem>>, vector<16x32xbf16>,
    return
  }
  func.func @transform_0(%arg0: i32) -> (i32, i32) {
    %c0_i32 = arith.constant 0 : i32
    %c0_i32_0 = arith.constant 0 : i32
    return %arg0, %c0_i32 : i32, i32
  }
  func.func @transform_1(%arg0: i32) -> (i32, i32) {
    %c0_i32 = arith.constant 0 : i32
    %c0_i32_0 = arith.constant 0 : i32
    %c0_i32_1 = arith.constant 0 : i32
    return %c0_i32, %c0_i32_0 : i32, i32
  }
  func.func @transform_2(%arg0: i32) -> (i32, i32) {
    %c0_i32 = arith.constant 0 : i32
    %c0_i32_0 = arith.constant 0 : i32
    %c0_i32_1 = arith.constant 0 : i32
    return %c0_i32, %c0_i32_0 : i32, i32
  }
  func.func @transform_3(%arg0: i32) -> (i32, i32) {
    %c0_i32 = arith.constant 0 : i32
    %c0_i32_0 = arith.constant 0 : i32
    %c0_i32_1 = arith.constant 0 : i32
    return %c0_i32, %c0_i32_0 : i32, i32
  }
  func.func @transform_4(%arg0: i32) -> (i32, i32) {
    %c0_i32 = arith.constant 0 : i32
    %c0_i32_0 = arith.constant 0 : i32
    %c0_i32_1 = arith.constant 0 : i32
    return %c0_i32, %c0_i32_0 : i32, i32
  }
  func.func @transform_5(%arg0: i32) -> (i32, i32) {
    %c0_i32 = arith.constant 0 : i32
    %c0_i32_0 = arith.constant 0 : i32
    %c0_i32_1 = arith.constant 0 : i32
    return %c0_i32, %c0_i32_0 : i32, i32
  }
  func.func @transform_6(%arg0: i32) -> (i32, i32) {
    %c0_i32 = arith.constant 0 : i32
    %c0_i32_0 = arith.constant 0 : i32
    %c0_i32_1 = arith.constant 0 : i32
    return %c0_i32, %c0_i32_0 : i32, i32
  }
  func.func @transform_7(%arg0: i32) -> (i32, i32) {
    %c0_i32 = arith.constant 0 : i32
    %c0_i32_0 = arith.constant 0 : i32
    %c0_i32_1 = arith.constant 0 : i32
    return %c0_i32, %c0_i32_0 : i32, i32
  }
  func.func @transform_8(%arg0: i32) -> (i32, i32) {
    %c0_i32 = arith.constant 0 : i32
    %c0_i32_0 = arith.constant 0 : i32
    %c0_i32_1 = arith.constant 0 : i32
    return %c0_i32, %c0_i32_0 : i32, i32
  }
  func.func @transform_9(%arg0: i32) -> (i32, i32) {
    %c0_i32 = arith.constant 0 : i32
    %c0_i32_0 = arith.constant 0 : i32
    %c0_i32_1 = arith.constant 0 : i32
    return %c0_i32, %c0_i32_0 : i32, i32
  }
  func.func @transform_10(%arg0: i32) -> (i32, i32) {
    %c0_i32 = arith.constant 0 : i32
    %c0_i32_0 = arith.constant 0 : i32
    %c0_i32_1 = arith.constant 0 : i32
    return %c0_i32, %c0_i32_0 : i32, i32
  }
  func.func @transform_11(%arg0: i32) -> (i32, i32) {
    %c0_i32 = arith.constant 0 : i32
    %c0_i32_0 = arith.constant 0 : i32
    %c0_i32_1 = arith.constant 0 : i32
    return %c0_i32, %c0_i32_0 : i32, i32
  }
  func.func @transform_12(%arg0: i32) -> (i32, i32) {
    %c0_i32 = arith.constant 0 : i32
    %c0_i32_0 = arith.constant 0 : i32
    return %arg0, %c0_i32 : i32, i32
  }
}

</mosaic_0001>

<llo_original>
// kernel: tpu_custom_call.1
$region0: #{tpu_custom_call.1}
  #allocation0 [shape = 'u32[]', space=smem, size = 0x4, offset = 0x4, fixed_abs, tag = 'smem constant byte address 0x4 - core index']
  #allocation1 [shape = 'u32[144,128]{1,0:T(1,128)}', space=vmem, size = 0x12000, scoped, tag = 'internal scratch']
  %s0 = inlined_call_operand.vmem [shape: f32[32,32], index: 0, kind: input, shape index: {}]
  %s1 = inlined_call_operand.vmem [shape: bf16[32,192], index: 1, kind: input, shape index: {}]
  %s2 = inlined_call_operand.vmem [shape: f32[1,192], index: 2, kind: input, shape index: {}]
  %s3 = inlined_call_operand.vmem [shape: bf16[32,32], index: 3, kind: input, shape index: {}]
  %s4 = inlined_call_operand.vmem [shape: f32[1,32], index: 4, kind: input, shape index: {}]
  %s5 = inlined_call_operand.vmem [shape: bf16[32,195], index: 5, kind: input, shape index: {}]
  %s6 = inlined_call_operand.vmem [shape: bf16[195,32], index: 6, kind: input, shape index: {}]
  %s7 = inlined_call_operand.vmem [shape: bf16[32,32], index: 7, kind: input, shape index: {}]
  %s8 = inlined_call_operand.vmem [shape: bf16[32,64], index: 8, kind: input, shape index: {}]
  %s9 = inlined_call_operand.vmem [shape: f32[1,64], index: 9, kind: input, shape index: {}]
  %s10 = inlined_call_operand.vmem [shape: bf16[64,32], index: 10, kind: input, shape index: {}]
  %s11 = inlined_call_operand.vmem [shape: f32[1,32], index: 11, kind: input, shape index: {}]
  %s12 = inlined_call_operand.hbm [shape: bf16[32,32], index: 12, kind: output, shape index: {}]
  %s13 = sld [smem:[#allocation0]]
  $region81: #{tpu_custom_call.1} parent=0
    _
  %s15 = ssub.s32 1, %s13
  %s16 = scalar_select 0, %s15, %s13
  $region1: #{tpu_custom_call.1} parent=0
    #allocation2 [shape = 'u8[8192]{0}', space=vmem, size = 0x2000, scoped, tag = 'output window, operand 0']
    #allocation3 [shape = 's32[2]{0}', space=sflag, size = 0x8, scoped, tag = 'scoped memory for tpu_custom_call.1']
    %17 = vsyncpa [#allocation3], 0
    %s18 = scalar_lea.sflag [#allocation3], 1
    %19 = vsyncpa %s18, 0
    loop: start=0, step=1, limit=4
    $region2: #{tpu_custom_call.1} parent=1 // loop_pre_header
      _
    $region3: #{tpu_custom_call.1} parent=1 // loop_header
      %s21 = sphi 0, %s25
      %p22 = scmp.ge.s32.totalorder %s21, 4
      %s31 = sphi 0, %s33
      %s34 = sphi 0, %s31
      %s35 = sphi 0, %s34
      %s51 = sphi 0, %s35
      %s55 = sphi 0, %s55
      %s57 = sphi 0, %s55
      %s58 = sphi 0, %s57
      %s72 = sphi 0, %s58
      %s76 = sphi 0, %s76
      %s78 = sphi 0, %s76
      %s79 = sphi 0, %s78
      %s93 = sphi 0, %s79
      %s97 = sphi 0, %s97
      %s99 = sphi 0, %s97
      %s100 = sphi 0, %s99
      %s114 = sphi 0, %s100
      %s118 = sphi 0, %s118
      %s120 = sphi 0, %s118
      %s121 = sphi 0, %s120
      %s135 = sphi 0, %s121
      %s139 = sphi 0, %s139
      %s141 = sphi 0, %s139
      %s142 = sphi 0, %s141
      %s156 = sphi 0, %s142
      %s160 = sphi 0, %s160
      %s162 = sphi 0, %s160
      %s163 = sphi 0, %s162
      %s177 = sphi 0, %s163
      %s181 = sphi 0, %s181
      %s183 = sphi 0, %s181
      %s184 = sphi 0, %s183
      %s198 = sphi 0, %s184
      %s202 = sphi 0, %s202
      %s204 = sphi 0, %s202
      %s205 = sphi 0, %s204
      %s219 = sphi 0, %s205
      %s223 = sphi 0, %s223
      %s225 = sphi 0, %s223
      %s226 = sphi 0, %s225
      %s240 = sphi 0, %s226
      %s244 = sphi 0, %s244
      %s246 = sphi 0, %s244
      %s247 = sphi 0, %s246
      %s261 = sphi 0, %s247
      %s265 = sphi 0, %s265
      %s267 = sphi 0, %s265
      %s268 = sphi 0, %s267
      %s282 = sphi 0, %s268
      %s288 = sphi 0, %s290
      %s291 = sphi 0, %s288
      %s292 = sphi 0, %s291
      %s308 = sphi 0, %s292
    $region4: #{tpu_custom_call.1} parent=1 // loop_header_branch
      %24 = sbr.rel (%p22) target = $region8
    $region5: #{tpu_custom_call.1} parent=1 // loop_body
      %s26 = ssub.s32 %s21, 1
      %s27 = ssub.s32 %s21, 2
      %s28 = sadd.s32 %s21, 1
      %s29 = ssub.s32 %s21, %s28
      %p30 = scmp.eq.s32.totalorder %s29, 0
      %s32 = sadd.s32 %s31, 1
      %s33 = scalar_select %p30, %s31, %s32
      %p36 = pneg %p30
      %p37 = scmp.eq.s32.totalorder %s21, 1
      %p38 = por %p36, %p37
      %p39 = scmp.ne.s32.totalorder %s31, %s34
      %p40 = scmp.eq.s32.totalorder %s21, 0
      %p41 = por %p39, %p40
      %p42 = scmp.ne.s32.totalorder %s31, %s34
      %p43 = scmp.eq.s32.totalorder %s26, 1
      %p44 = por %p42, %p43
      %p45 = scmp.ne.s32.totalorder %s34, %s35
      %p46 = scmp.eq.s32.totalorder %s26, 0
      %p47 = por %p45, %p46
      %p48 = scmp.ne.s32.totalorder %s34, %s35
      %p49 = scmp.eq.s32.totalorder %s27, 1
      %p50 = por %p48, %p49
      %p52 = scmp.ne.s32.totalorder %s35, %s51
      %p53 = scmp.eq.s32.totalorder %s27, 0
      %p54 = por %p52, %p53
      %s56 = sadd.s32 %s55, 1
      %p59 = scmp.eq.s32.totalorder %s21, 1
      %p60 = scmp.ne.s32.totalorder %s55, %s57
      %p61 = scmp.eq.s32.totalorder %s21, 0
      %p62 = por %p60, %p61
      %p63 = scmp.ne.s32.totalorder %s55, %s57
      %p64 = scmp.eq.s32.totalorder %s26, 1
      %p65 = por %p63, %p64
      %p66 = scmp.ne.s32.totalorder %s57, %s58
      %p67 = scmp.eq.s32.totalorder %s26, 0
      %p68 = por %p66, %p67
      %p69 = scmp.ne.s32.totalorder %s57, %s58
      %p70 = scmp.eq.s32.totalorder %s27, 1
      %p71 = por %p69, %p70
      %p73 = scmp.ne.s32.totalorder %s58, %s72
      %p74 = scmp.eq.s32.totalorder %s27, 0
      %p75 = por %p73, %p74
      %s77 = sadd.s32 %s76, 1
      %p80 = scmp.eq.s32.totalorder %s21, 1
      %p81 = scmp.ne.s32.totalorder %s76, %s78
      %p82 = scmp.eq.s32.totalorder %s21, 0
      %p83 = por %p81, %p82
      %p84 = scmp.ne.s32.totalorder %s76, %s78
      %p85 = scmp.eq.s32.totalorder %s26, 1
      %p86 = por %p84, %p85
      %p87 = scmp.ne.s32.totalorder %s78, %s79
      %p88 = scmp.eq.s32.totalorder %s26, 0
      %p89 = por %p87, %p88
      %p90 = scmp.ne.s32.totalorder %s78, %s79
      %p91 = scmp.eq.s32.totalorder %s27, 1
      %p92 = por %p90, %p91
      %p94 = scmp.ne.s32.totalorder %s79, %s93
      %p95 = scmp.eq.s32.totalorder %s27, 0
      %p96 = por %p94, %p95
      %s98 = sadd.s32 %s97, 1
      %p101 = scmp.eq.s32.totalorder %s21, 1
      %p102 = scmp.ne.s32.totalorder %s97, %s99
      %p103 = scmp.eq.s32.totalorder %s21, 0
      %p104 = por %p102, %p103
      %p105 = scmp.ne.s32.totalorder %s97, %s99
      %p106 = scmp.eq.s32.totalorder %s26, 1
      %p107 = por %p105, %p106
      %p108 = scmp.ne.s32.totalorder %s99, %s100
      %p109 = scmp.eq.s32.totalorder %s26, 0
      %p110 = por %p108, %p109
      %p111 = scmp.ne.s32.totalorder %s99, %s100
      %p112 = scmp.eq.s32.totalorder %s27, 1
      %p113 = por %p111, %p112
      %p115 = scmp.ne.s32.totalorder %s100, %s114
      %p116 = scmp.eq.s32.totalorder %s27, 0
      %p117 = por %p115, %p116
      %s119 = sadd.s32 %s118, 1
      %p122 = scmp.eq.s32.totalorder %s21, 1
      %p123 = scmp.ne.s32.totalorder %s118, %s120
      %p124 = scmp.eq.s32.totalorder %s21, 0
      %p125 = por %p123, %p124
      %p126 = scmp.ne.s32.totalorder %s118, %s120
      %p127 = scmp.eq.s32.totalorder %s26, 1
      %p128 = por %p126, %p127
      %p129 = scmp.ne.s32.totalorder %s120, %s121
      %p130 = scmp.eq.s32.totalorder %s26, 0
      %p131 = por %p129, %p130
      %p132 = scmp.ne.s32.totalorder %s120, %s121
      %p133 = scmp.eq.s32.totalorder %s27, 1
      %p134 = por %p132, %p133
      %p136 = scmp.ne.s32.totalorder %s121, %s135
      %p137 = scmp.eq.s32.totalorder %s27, 0
      %p138 = por %p136, %p137
      %s140 = sadd.s32 %s139, 1
      %p143 = scmp.eq.s32.totalorder %s21, 1
      %p144 = scmp.ne.s32.totalorder %s139, %s141
      %p145 = scmp.eq.s32.totalorder %s21, 0
      %p146 = por %p144, %p145
      %p147 = scmp.ne.s32.totalorder %s139, %s141
      %p148 = scmp.eq.s32.totalorder %s26, 1
      %p149 = por %p147, %p148
      %p150 = scmp.ne.s32.totalorder %s141, %s142
      %p151 = scmp.eq.s32.totalorder %s26, 0
      %p152 = por %p150, %p151
      %p153 = scmp.ne.s32.totalorder %s141, %s142
      %p154 = scmp.eq.s32.totalorder %s27, 1
      %p155 = por %p153, %p154
      %p157 = scmp.ne.s32.totalorder %s142, %s156
      %p158 = scmp.eq.s32.totalorder %s27, 0
      %p159 = por %p157, %p158
      %s161 = sadd.s32 %s160, 1
      %p164 = scmp.eq.s32.totalorder %s21, 1
      %p165 = scmp.ne.s32.totalorder %s160, %s162
      %p166 = scmp.eq.s32.totalorder %s21, 0
      %p167 = por %p165, %p166
      %p168 = scmp.ne.s32.totalorder %s160, %s162
      %p169 = scmp.eq.s32.totalorder %s26, 1
      %p170 = por %p168, %p169
      %p171 = scmp.ne.s32.totalorder %s162, %s163
      %p172 = scmp.eq.s32.totalorder %s26, 0
      %p173 = por %p171, %p172
      %p174 = scmp.ne.s32.totalorder %s162, %s163
      %p175 = scmp.eq.s32.totalorder %s27, 1
      %p176 = por %p174, %p175
      %p178 = scmp.ne.s32.totalorder %s163, %s177
      %p179 = scmp.eq.s32.totalorder %s27, 0
      %p180 = por %p178, %p179
      %s182 = sadd.s32 %s181, 1
      %p185 = scmp.eq.s32.totalorder %s21, 1
      %p186 = scmp.ne.s32.totalorder %s181, %s183
      %p187 = scmp.eq.s32.totalorder %s21, 0
      %p188 = por %p186, %p187
      %p189 = scmp.ne.s32.totalorder %s181, %s183
      %p190 = scmp.eq.s32.totalorder %s26, 1
      %p191 = por %p189, %p190
      %p192 = scmp.ne.s32.totalorder %s183, %s184
      %p193 = scmp.eq.s32.totalorder %s26, 0
      %p194 = por %p192, %p193
      %p195 = scmp.ne.s32.totalorder %s183, %s184
      %p196 = scmp.eq.s32.totalorder %s27, 1
      %p197 = por %p195, %p196
      %p199 = scmp.ne.s32.totalorder %s184, %s198
      %p200 = scmp.eq.s32.totalorder %s27, 0
      %p201 = por %p199, %p200
      %s203 = sadd.s32 %s202, 1
      %p206 = scmp.eq.s32.totalorder %s21, 1
      %p207 = scmp.ne.s32.totalorder %s202, %s204
      %p208 = scmp.eq.s32.totalorder %s21, 0
      %p209 = por %p207, %p208
      %p210 = scmp.ne.s32.totalorder %s202, %s204
      %p211 = scmp.eq.s32.totalorder %s26, 1
      %p212 = por %p210, %p211
      %p213 = scmp.ne.s32.totalorder %s204, %s205
      %p214 = scmp.eq.s32.totalorder %s26, 0
      %p215 = por %p213, %p214
      %p216 = scmp.ne.s32.totalorder %s204, %s205
      %p217 = scmp.eq.s32.totalorder %s27, 1
      %p218 = por %p216, %p217
      %p220 = scmp.ne.s32.totalorder %s205, %s219
      %p221 = scmp.eq.s32.totalorder %s27, 0
      %p222 = por %p220, %p221
      %s224 = sadd.s32 %s223, 1
      %p227 = scmp.eq.s32.totalorder %s21, 1
      %p228 = scmp.ne.s32.totalorder %s223, %s225
      %p229 = scmp.eq.s32.totalorder %s21, 0
      %p230 = por %p228, %p229
      %p231 = scmp.ne.s32.totalorder %s223, %s225
      %p232 = scmp.eq.s32.totalorder %s26, 1
      %p233 = por %p231, %p232
      %p234 = scmp.ne.s32.totalorder %s225, %s226
      %p235 = scmp.eq.s32.totalorder %s26, 0
      %p236 = por %p234, %p235
      %p237 = scmp.ne.s32.totalorder %s225, %s226
      %p238 = scmp.eq.s32.totalorder %s27, 1
      %p239 = por %p237, %p238
      %p241 = scmp.ne.s32.totalorder %s226, %s240
      %p242 = scmp.eq.s32.totalorder %s27, 0
      %p243 = por %p241, %p242
      %s245 = sadd.s32 %s244, 1
      %p248 = scmp.eq.s32.totalorder %s21, 1
      %p249 = scmp.ne.s32.totalorder %s244, %s246
      %p250 = scmp.eq.s32.totalorder %s21, 0
      %p251 = por %p249, %p250
      %p252 = scmp.ne.s32.totalorder %s244, %s246
      %p253 = scmp.eq.s32.totalorder %s26, 1
      %p254 = por %p252, %p253
      %p255 = scmp.ne.s32.totalorder %s246, %s247
      %p256 = scmp.eq.s32.totalorder %s26, 0
      %p257 = por %p255, %p256
      %p258 = scmp.ne.s32.totalorder %s246, %s247
      %p259 = scmp.eq.s32.totalorder %s27, 1
      %p260 = por %p258, %p259
      %p262 = scmp.ne.s32.totalorder %s247, %s261
      %p263 = scmp.eq.s32.totalorder %s27, 0
      %p264 = por %p262, %p263
      %s266 = sadd.s32 %s265, 1
      %p269 = scmp.eq.s32.totalorder %s21, 1
      %p270 = scmp.ne.s32.totalorder %s265, %s267
      %p271 = scmp.eq.s32.totalorder %s21, 0
      %p272 = por %p270, %p271
      %p273 = scmp.ne.s32.totalorder %s265, %s267
      %p274 = scmp.eq.s32.totalorder %s26, 1
      %p275 = por %p273, %p274
      %p276 = scmp.ne.s32.totalorder %s267, %s268
      %p277 = scmp.eq.s32.totalorder %s26, 0
      %p278 = por %p276, %p277
      %p279 = scmp.ne.s32.totalorder %s267, %s268
      %p280 = scmp.eq.s32.totalorder %s27, 1
      %p281 = por %p279, %p280
      %p283 = scmp.ne.s32.totalorder %s268, %s282
      %p284 = scmp.eq.s32.totalorder %s27, 0
      %p285 = por %p283, %p284
      %s286 = ssub.s32 %s21, %s28
      %p287 = scmp.eq.s32.totalorder %s286, 0
      %s289 = sadd.s32 %s288, 1
      %s290 = scalar_select %p287, %s288, %s289
      %p293 = pneg %p287
      %p294 = scmp.eq.s32.totalorder %s21, 1
      %p295 = por %p293, %p294
      %p296 = scmp.ne.s32.totalorder %s288, %s291
      %p297 = scmp.eq.s32.totalorder %s21, 0
      %p298 = por %p296, %p297
      %p299 = scmp.ne.s32.totalorder %s288, %s291
      %p300 = scmp.eq.s32.totalorder %s26, 1
      %p301 = por %p299, %p300
      %p302 = scmp.ne.s32.totalorder %s291, %s292
      %p303 = scmp.eq.s32.totalorder %s26, 0
      %p304 = por %p302, %p303
      %p305 = scmp.ne.s32.totalorder %s291, %s292
      %p306 = scmp.eq.s32.totalorder %s27, 1
      %p307 = por %p305, %p306
      %p309 = scmp.ne.s32.totalorder %s292, %s308
      %p310 = scmp.eq.s32.totalorder %s27, 0
      %p311 = por %p309, %p310
      %p312 = scmp.le.s32.totalorder 1, %s21
      %p313 = scmp.lt.s32.totalorder %s21, 3
      %p314 = pnand %p312, %p313
      %p315 = pneg %p314
      // Predicated region
      $region9: #{tpu_custom_call.1} parent=5 // pred_check
        _
      $region10: #{tpu_custom_call.1} parent=5 // pred_check_branch
        %317 = sbr.rel (%p314) target = $region12
      $region11: #{tpu_custom_call.1} parent=5 // pred_region
        %s318 = ssub.s32 %s21, 1
        // Predicated region
        $region13: #{tpu_custom_call.1} parent=11 // pred_check
          %p319 = pneg %p68
        $region14: #{tpu_custom_call.1} parent=11 // pred_check_branch
          %321 = sbr.rel (%p319) target = $region16
        $region15: #{tpu_custom_call.1} parent=11 // pred_region
          _
        $region16: #{tpu_custom_call.1} parent=11 // pred_fallthru
          _
        // Predicated region
        $region17: #{tpu_custom_call.1} parent=11 // pred_check
          %p322 = pneg %p89
        $region18: #{tpu_custom_call.1} parent=11 // pred_check_branch
          %324 = sbr.rel (%p322) target = $region20
        $region19: #{tpu_custom_call.1} parent=11 // pred_region
          _
        $region20: #{tpu_custom_call.1} parent=11 // pred_fallthru
          _
        // Predicated region
        $region21: #{tpu_custom_call.1} parent=11 // pred_check
          %p325 = pneg %p110
        $region22: #{tpu_custom_call.1} parent=11 // pred_check_branch
          %327 = sbr.rel (%p325) target = $region24
        $region23: #{tpu_custom_call.1} parent=11 // pred_region
          _
        $region24: #{tpu_custom_call.1} parent=11 // pred_fallthru
          _
        // Predicated region
        $region25: #{tpu_custom_call.1} parent=11 // pred_check
          %p328 = pneg %p131
        $region26: #{tpu_custom_call.1} parent=11 // pred_check_branch
          %330 = sbr.rel (%p328) target = $region28
        $region27: #{tpu_custom_call.1} parent=11 // pred_region
          _
        $region28: #{tpu_custom_call.1} parent=11 // pred_fallthru
          _
        // Predicated region
        $region29: #{tpu_custom_call.1} parent=11 // pred_check
          %p331 = pneg %p152
        $region30: #{tpu_custom_call.1} parent=11 // pred_check_branch
          %333 = sbr.rel (%p331) target = $region32
        $region31: #{tpu_custom_call.1} parent=11 // pred_region
          _
        $region32: #{tpu_custom_call.1} parent=11 // pred_fallthru
          _
        // Predicated region
        $region33: #{tpu_custom_call.1} parent=11 // pred_check
          %p334 = pneg %p173
        $region34: #{tpu_custom_call.1} parent=11 // pred_check_branch
          %336 = sbr.rel (%p334) target = $region36
        $region35: #{tpu_custom_call.1} parent=11 // pred_region
          _
        $region36: #{tpu_custom_call.1} parent=11 // pred_fallthru
          _
        // Predicated region
        $region37: #{tpu_custom_call.1} parent=11 // pred_check
          %p337 = pneg %p194
        $region38: #{tpu_custom_call.1} parent=11 // pred_check_branch
          %339 = sbr.rel (%p337) target = $region40
        $region39: #{tpu_custom_call.1} parent=11 // pred_region
          _
        $region40: #{tpu_custom_call.1} parent=11 // pred_fallthru
          _
        // Predicated region
        $region41: #{tpu_custom_call.1} parent=11 // pred_check
          %p340 = pneg %p215
        $region42: #{tpu_custom_call.1} parent=11 // pred_check_branch
          %342 = sbr.rel (%p340) target = $region44
        $region43: #{tpu_custom_call.1} parent=11 // pred_region
          _
        $region44: #{tpu_custom_call.1} parent=11 // pred_fallthru
          _
        // Predicated region
        $region45: #{tpu_custom_call.1} parent=11 // pred_check
          %p343 = pneg %p236
        $region46: #{tpu_custom_call.1} parent=11 // pred_check_branch
          %345 = sbr.rel (%p343) target = $region48
        $region47: #{tpu_custom_call.1} parent=11 // pred_region
          _
        $region48: #{tpu_custom_call.1} parent=11 // pred_fallthru
          _
        // Predicated region
        $region49: #{tpu_custom_call.1} parent=11 // pred_check
          %p346 = pneg %p257
        $region50: #{tpu_custom_call.1} parent=11 // pred_check_branch
          %348 = sbr.rel (%p346) target = $region52
        $region51: #{tpu_custom_call.1} parent=11 // pred_region
          _
        $region52: #{tpu_custom_call.1} parent=11 // pred_fallthru
          _
        // Predicated region
        $region53: #{tpu_custom_call.1} parent=11 // pred_check
          %p349 = pneg %p278
        $region54: #{tpu_custom_call.1} parent=11 // pred_check_branch
          %351 = sbr.rel (%p349) target = $region56
        $region55: #{tpu_custom_call.1} parent=11 // pred_region
          _
        $region56: #{tpu_custom_call.1} parent=11 // pred_fallthru
          _
      $region12: #{tpu_custom_call.1} parent=5 // pred_fallthru
        _
      %p352 = scmp.lt.s32.totalorder %s21, 2
      // Predicated region
      $region57: #{tpu_custom_call.1} parent=5 // pred_check
        %p353 = pneg %p352
      $region58: #{tpu_custom_call.1} parent=5 // pred_check_branch
        %355 = sbr.rel (%p353) target = $region60
      $region59: #{tpu_custom_call.1} parent=5 // pred_region
        // Predicated region
        $region61: #{tpu_custom_call.1} parent=59 // pred_check
          %p356 = pneg %p41
        $region62: #{tpu_custom_call.1} parent=59 // pred_check_branch
          %358 = sbr.rel (%p356) target = $region64
        $region63: #{tpu_custom_call.1} parent=59 // pred_region
          %s359 = smul.u32 2, %s21
          %p360 = scmp.lt.s32.totalorder %s359, 3
          %s361 = scalar_select %p360, %s359, 3
          %s362 = smul.addr %s361, 8
          %s363 = scalar_lea.vmem %s0, %s362
          %s364 = smul.u32 2, %s21
        $region64: #{tpu_custom_call.1} parent=59 // pred_fallthru
          _
      $region60: #{tpu_custom_call.1} parent=5 // pred_fallthru
        _
      %p365 = scmp.le.s32.totalorder 1, %s21
      %p366 = scmp.lt.s32.totalorder %s21, 3
      %p367 = pnand %p365, %p366
      %p368 = pneg %p367
      // Predicated region
      $region65: #{tpu_custom_call.1} parent=5 // pred_check
        _
      $region66: #{tpu_custom_call.1} parent=5 // pred_check_branch
        %370 = sbr.rel (%p367) target = $region68
      $region67: #{tpu_custom_call.1} parent=5 // pred_region
        %s371 = ssub.s32 %s21, 1
        %s372 = smul.u32 2, %s26
        %p373 = scmp.lt.s32.totalorder %s372, 3
        %s374 = scalar_select %p373, %s372, 3
        %s375 = smul.addr %s374, 8
        %s376 = scalar_lea.vmem %s0, %s375
        %p377 = pneg %p47
        %p378 = pneg %p44
        %p379 = pneg %p68
        %p380 = pneg %p65
        %p381 = pneg %p89
        %p382 = pneg %p86
        %p383 = pneg %p110
        %p384 = pneg %p107
        %p385 = pneg %p131
        %p386 = pneg %p128
        %p387 = pneg %p152
        %p388 = pneg %p149
        %p389 = pneg %p173
        %p390 = pneg %p170
        %p391 = pneg %p194
        %p392 = pneg %p191
        %p393 = pneg %p215
        %p394 = pneg %p212
        %p395 = pneg %p236
        %p396 = pneg %p233
        %p397 = pneg %p257
        %p398 = pneg %p254
        %p399 = pneg %p278
        %p400 = pneg %p275
        %p401 = pneg %p304
        %p402 = pneg %p301
        %s403 = sand.u32 %s291, 1
        %s404 = scalar_lea.sflag [#allocation3], %s403
        %s405 = sand.u32 %s291, 1
        %s406 = smul.addr %s405, 8
        %s407 = scalar_lea.vmem [#allocation2], %s406
        %s408 = smul.u32 2, %s26
        %p409 = scmp.lt.s32.totalorder %s408, 3
        %s410 = scalar_select %p409, %s408, 3
        %s411 = smul.addr %s410, 8
        %s412 = scalar_lea.vmem %s0, %s411
        %s413 = smul.u32 2, %s26
        %s414 = smul.u32 2, %s26
        %v416 = vld [vmem:[%s412] sm:$0xff]
        %v417 = vld [vmem:[%s412 + $0x8] sm:$0xff]
        %v418 = vpack.c.bf16 %v417, %v416
        %v419 = vld [vmem:[%s1] sm:$0xff]
        %v420 = vld [vmem:[%s1 + $0x8] sm:$0xff]
        %v421 = vld [vmem:[%s1 + $0x10] sm:$0xff]
        %v422 = vld [vmem:[%s1 + $0x18] sm:$0xff]
        %v423 = vld [vmem:[%s2] sm:$0x3]
        %v425 = vlaneseq
        %v426 = vshrl.u32 %v425, 7
        %v427 = vsub.s32 0, %v426
        %v428 = vrot.slane %v423, %v427
        %v429 = vlaneseq
        %v430 = vshrl.u32 %v429, 7
        %v431 = vsub.s32 1, %v430
        %v432 = vrot.slane %v423, %v431
        %v439 = vunpack.c.l.b16 %v419
        %v440 = vunpack.c.h.b16 %v419
        %v441 = vunpack.c.l.b16 %v420
        %v442 = vunpack.c.h.b16 %v420
        %v443 = vunpack.c.l.b16 %v421
        %v444 = vunpack.c.h.b16 %v421
        %v445 = vunpack.c.l.b16 %v422
        %v446 = vunpack.c.h.b16 %v422
        %v447 = vpack.c.b16 %v441, %v439
        %v448 = vpack.c.b16 %v442, %v440
        %v449 = vpack.c.b16 %v445, %v443
        %v450 = vpack.c.b16 %v446, %v444
        %vm455 = vcmask 261120
        %v457 = vsel %vm455, %v418, 0
        %459 = vmatprep.subr.bf16.mxu0 0
        %460 = vmatpush1.bf16.msra.mxu0 0
        %461 = vmatprep.subr.bf16.mxu0 0
        %462 = vmatpush1.bf16.msra.mxu0 0
        %463 = vmatprep.subr.bf16.mxu0 0
        %464 = vmatpush1.bf16.msra.mxu0 0
        %465 = vmatprep.subr.bf16.mxu0 0
        %466 = vmatpush1.bf16.msra.mxu0 0
        %467 = vmatprep.subr.bf16.mxu0 0
        %468 = vmatpush1.bf16.msra.mxu0 0
        %469 = vmatprep.subr.bf16.mxu0 0
        %470 = vmatpush1.bf16.msra.mxu0 0
        %471 = vmatprep.subr.bf16.mxu0 %v450
        %472 = vmatpush1.bf16.msra.mxu0 %v449
        %473 = vmatprep.subr.bf16.mxu0 %v448
        %474 = vmatpush1.bf16.msra.mxu0 %v447
        %475 = vmatprep.subr.bf16.mxu0 0
        %476 = vmatpush2.bf16.msra.mxu0 0
        %477 = vmatprep.subr.bf16.mxu0 0
        %478 = vmatpush2.bf16.msra.mxu0 0
        %479 = vmatprep.subr.bf16.mxu0 0
        %480 = vmatpush2.bf16.msra.mxu0 0
        %481 = vmatprep.subr.bf16.mxu0 0
        %482 = vmatpush2.bf16.msra.mxu0 0
        %483 = vmatprep.subr.bf16.mxu0 0
        %484 = vmatpush2.bf16.msra.mxu0 0
        %485 = vmatprep.subr.bf16.mxu0 0
        %486 = vmatpush2.bf16.msra.mxu0 0
        %487 = vmatprep.subr.bf16.mxu0 0
        %488 = vmatpush2.bf16.msra.mxu0 0
        %489 = vmatprep.subr.bf16.mxu0 0
        %490 = vmatpush2.bf16.msra.mxu0 0
        %491 = vmatprep.mubr.bf16.mxu0 0
        %492 = vmatmul.mubr.bf16.gmra.mxu0 %v457
        %v493 = vpop.f32.mrf.mxu0
        %v494 = vadd.f32 %v428, %v493
        %v495 = vpop.f32.mrf.mxu0
        %v496 = vadd.f32 %v432, %v495
        %v497 = vpop.f32.mrf.mxu0
        %v498 = vadd.f32 %v428, %v497
        %v499 = vpop.f32.mrf.mxu0
        %v500 = vadd.f32 %v432, %v499
        %501 = vdwg.mxu0
        %v502 = vmul.f32 %v494, 0.5
        %v503 = vmul.f32 %v496, 0.5
        %v504 = vmul.f32 %v498, 0.5
        %v505 = vmul.f32 %v500, 0.5
        %v506 = vmul.f32 %v494, 0.70710677
        %v507 = vmul.f32 %v496, 0.70710677
        %v508 = vmul.f32 %v498, 0.70710677
        %v509 = vmul.f32 %v500, 0.70710677
        %v510 = verf.f32.pop %v506
        %v511 = verf.f32.pop %v507
        %v512 = verf.f32.pop %v508
        %v513 = verf.f32.pop %v509
        %v514 = vadd.f32 %v510, 1.0
        %v515 = vadd.f32 %v511, 1.0
        %v516 = vadd.f32 %v512, 1.0
        %v517 = vadd.f32 %v513, 1.0
        %v518 = vmul.f32 %v502, %v514
        %v519 = vmul.f32 %v503, %v515
        %v520 = vmul.f32 %v504, %v516
        %v521 = vmul.f32 %v505, %v517
        %v522 = vld [vmem:[%s3] sm:$0xf]
        %v523 = vld [vmem:[%s3 + $0x4] sm:$0xf]
        %v524 = vld [vmem:[%s3 + $0x8] sm:$0xf]
        %v525 = vld [vmem:[%s3 + $0xc] sm:$0xf]
        %v526 = vld [vmem:[%s4] sm:$0x1]
        %v528 = vlaneseq
        %v529 = vshrl.u32 %v528, 7
        %v530 = vsub.s32 0, %v529
        %v531 = vrot.slane %v526, %v530
        %v537 = vunpack.c.l.b16 %v522
        %v538 = vunpack.c.l.b16 %v523
        %v539 = vunpack.c.l.b16 %v524
        %v540 = vunpack.c.l.b16 %v525
        %v541 = vpack.c.b16 %v538, %v537
        %v542 = vpack.c.b16 %v540, %v539
        %545 = vmatprep.subr.bf16.mxu0 0
        %546 = vmatpush1.bf16.msra.mxu0 0
        %547 = vmatprep.subr.bf16.mxu0 0
        %548 = vmatpush1.bf16.msra.mxu0 0
        %549 = vmatprep.subr.bf16.mxu0 0
        %550 = vmatpush1.bf16.msra.mxu0 0
        %551 = vmatprep.subr.bf16.mxu0 0
        %552 = vmatpush1.bf16.msra.mxu0 0
        %553 = vmatprep.subr.bf16.mxu0 0
        %554 = vmatpush1.bf16.msra.mxu0 0
        %555 = vmatprep.subr.bf16.mxu0 0
        %556 = vmatpush1.bf16.msra.mxu0 0
        %557 = vmatprep.subr.bf16.mxu0 0
        %558 = vmatpush1.bf16.msra.mxu0 %v542
        %559 = vmatprep.subr.bf16.mxu0 0
        %560 = vmatpush1.bf16.msra.mxu0 %v541
        %561 = vmatprep.subr.bf16.mxu0 0
        %562 = vmatpush2.bf16.msra.mxu0 0
        %563 = vmatprep.subr.bf16.mxu0 0
        %564 = vmatpush2.bf16.msra.mxu0 0
        %565 = vmatprep.subr.bf16.mxu0 0
        %566 = vmatpush2.bf16.msra.mxu0 0
        %567 = vmatprep.subr.bf16.mxu0 0
        %568 = vmatpush2.bf16.msra.mxu0 0
        %569 = vmatprep.subr.bf16.mxu0 0
        %570 = vmatpush2.bf16.msra.mxu0 0
        %571 = vmatprep.subr.bf16.mxu0 0
        %572 = vmatpush2.bf16.msra.mxu0 0
        %573 = vmatprep.subr.bf16.mxu0 0
        %574 = vmatpush2.bf16.msra.mxu0 0
        %575 = vmatprep.subr.bf16.mxu0 0
        %576 = vmatpush2.bf16.msra.mxu0 0
        %577 = vmatprep.mubr.bf16.mxu0 0
        %578 = vmatmul.mubr.bf16.gmra.mxu0 %v457
        %v579 = vpop.f32.mrf.mxu0
        %v580 = vadd.f32 %v531, %v579
        %v581 = vpop.f32.mrf.mxu0
        %v582 = vpop.f32.mrf.mxu0
        %v583 = vadd.f32 %v531, %v582
        %v584 = vpop.f32.mrf.mxu0
        %585 = vdwg.mxu0
        %v586 = vpack.c.bf16 %v583, %v580
        %v587 = vld [vmem:[%s5] sm:$0xff]
        %v588 = vld [vmem:[%s5 + $0x8] sm:$0xff]
        %v589 = vld [vmem:[%s5 + $0x10] sm:$0xff]
        %v590 = vld [vmem:[%s5 + $0x18] sm:$0xff]
        %v595 = vunpack.c.l.b16 %v587
        %v596 = vunpack.c.h.b16 %v587
        %v597 = vunpack.c.l.b16 %v588
        %v598 = vunpack.c.h.b16 %v588
        %v599 = vunpack.c.l.b16 %v589
        %v600 = vunpack.c.h.b16 %v589
        %v601 = vunpack.c.l.b16 %v590
        %v602 = vunpack.c.h.b16 %v590
        %v603 = vpack.c.b16 %v597, %v595
        %v604 = vpack.c.b16 %v598, %v596
        %v605 = vpack.c.b16 %v601, %v599
        %v606 = vpack.c.b16 %v602, %v600
        %v612 = vsel %vm455, %v586, 0
        %614 = vmatprep.subr.bf16.mxu0 0
        %615 = vmatpush1.bf16.msra.mxu0 0
        %616 = vmatprep.subr.bf16.mxu0 0
        %617 = vmatpush1.bf16.msra.mxu0 0
        %618 = vmatprep.subr.bf16.mxu0 0
        %619 = vmatpush1.bf16.msra.mxu0 0
        %620 = vmatprep.subr.bf16.mxu0 0
        %621 = vmatpush1.bf16.msra.mxu0 0
        %622 = vmatprep.subr.bf16.mxu0 0
        %623 = vmatpush1.bf16.msra.mxu0 0
        %624 = vmatprep.subr.bf16.mxu0 0
        %625 = vmatpush1.bf16.msra.mxu0 0
        %626 = vmatprep.subr.bf16.mxu0 %v606
        %627 = vmatpush1.bf16.msra.mxu0 %v605
        %628 = vmatprep.subr.bf16.mxu0 %v604
        %629 = vmatpush1.bf16.msra.mxu0 %v603
        %630 = vmatprep.subr.bf16.mxu0 0
        %631 = vmatpush2.bf16.msra.mxu0 0
        %632 = vmatprep.subr.bf16.mxu0 0
        %633 = vmatpush2.bf16.msra.mxu0 0
        %634 = vmatprep.subr.bf16.mxu0 0
        %635 = vmatpush2.bf16.msra.mxu0 0
        %636 = vmatprep.subr.bf16.mxu0 0
        %637 = vmatpush2.bf16.msra.mxu0 0
        %638 = vmatprep.subr.bf16.mxu0 0
        %639 = vmatpush2.bf16.msra.mxu0 0
        %640 = vmatprep.subr.bf16.mxu0 0
        %641 = vmatpush2.bf16.msra.mxu0 0
        %642 = vmatprep.subr.bf16.mxu0 0
        %643 = vmatpush2.bf16.msra.mxu0 0
        %644 = vmatprep.subr.bf16.mxu0 0
        %645 = vmatpush2.bf16.msra.mxu0 0
        %646 = vmatprep.mubr.bf16.mxu0 0
        %647 = vmatmul.mubr.bf16.gmra.mxu0 %v612
        %v648 = vpop.f32.mrf.mxu0
        %v649 = vadd.f32 0.0, %v648
        %v650 = vpop.f32.mrf.mxu0
        %v651 = vadd.f32 0.0, %v650
        %v652 = vpop.f32.mrf.mxu0
        %v653 = vadd.f32 0.0, %v652
        %v654 = vpop.f32.mrf.mxu0
        %v655 = vadd.f32 0.0, %v654
        %656 = vdwg.mxu0
        %v657 = vmul.f32 %v518, %v649
        %v658 = vmul.f32 %v519, %v651
        %v659 = vmul.f32 %v520, %v653
        %v660 = vmul.f32 %v521, %v655
        %vm661 = vcmask 523264
        %v662 = vsel %vm661, %v657, 0.0
        %663 = vadd.xlane.f32.xlu0 %v662
        %v664 = vpop.xlane.xlu0 %663
        %v665 = vsel %vm661, %v659, 0.0
        %666 = vadd.xlane.f32.xlu0 %v665
        %v667 = vpop.xlane.xlu0 %666
        %670 = vrot.lane.b32.xlu0 %v657, 64
        %v671 = vpop.permute.xlu0 %670
        %672 = vrot.lane.b32.xlu0 %v659, 64
        %v673 = vpop.permute.xlu0 %672
        %v676 = vsel %vm661, %v671, 0.0
        %677 = vadd.xlane.f32.xlu0 %v676
        %v678 = vpop.xlane.xlu0 %677
        %v679 = vsel %vm661, %v673, 0.0
        %680 = vadd.xlane.f32.xlu0 %v679
        %v681 = vpop.xlane.xlu0 %680
        %v682 = vsel %vm661, %v658, 0.0
        %683 = vadd.xlane.f32.xlu0 %v682
        %v684 = vpop.xlane.xlu0 %683
        %v685 = vsel %vm661, %v660, 0.0
        %686 = vadd.xlane.f32.xlu0 %v685
        %v687 = vpop.xlane.xlu0 %686
        %vm688 = vcmask 7168
        %v689 = vsel %vm688, %v664, %v678
        %v690 = vsel %vm688, %v667, %v681
        %vm691 = vcmask 15360
        %v692 = vsel %vm691, %v689, %v684
        %v693 = vsel %vm691, %v690, %v687
        %696 = vrot.lane.b32.xlu0 %v651, 64
        %v697 = vpop.permute.xlu0 %696
        %698 = vrot.lane.b32.xlu0 %v655, 64
        %v699 = vpop.permute.xlu0 %698
        %v702 = vadd.f32 %v692, %v697
        %v703 = vadd.f32 %v693, %v699
        %vm704 = vcmask 23552
        %v705 = vsel %vm704, %v702, -inf
        %706 = vmax.xlane.f32.xlu0 %v705
        %v707 = vpop.xlane.xlu0 %706
        %v708 = vsel %vm704, %v703, -inf
        %709 = vmax.xlane.f32.xlu0 %v708
        %v710 = vpop.xlane.xlu0 %709
        %v711 = vsub.f32 %v702, %v707
        %v712 = vsub.f32 %v703, %v710
        %v713 = vmul.f32 %v711, 1.442695
        %v714 = vpow.pop %v713
        %v715 = vmul.f32 %v712, 1.442695
        %v716 = vpow.pop %v715
        %v717 = vsel %vm704, %v714, 0.0
        %718 = vadd.xlane.f32.xlu0 %v717
        %v719 = vpop.xlane.xlu0 %718
        %v720 = vsel %vm704, %v716, 0.0
        %721 = vadd.xlane.f32.xlu0 %v720
        %v722 = vpop.xlane.xlu0 %721
        %v723 = vrcp.pop %v719
        %v724 = vmul.f32 %v714, %v723
        %v725 = vrcp.pop %v722
        %v726 = vmul.f32 %v716, %v725
        %728 = vset.pattern.permute.xlu0 0
        %729 = vperm.xlu0 %728, %v724
        %v730 = vpop.permute.xlu0 %729
        %733 = vset.pattern.permute.xlu0 0
        %734 = vperm.xlu0 %733, %v726
        %v735 = vpop.permute.xlu0 %734
        %v737 = vmul.f32 %v518, %v730
        %v738 = vmul.f32 %v520, %v735
        %739 = vset.pattern.permute.xlu0 1
        %740 = vperm.xlu0 %739, %v724
        %v741 = vpop.permute.xlu0 %740
        %743 = vset.pattern.permute.xlu0 1
        %744 = vperm.xlu0 %743, %v726
        %v745 = vpop.permute.xlu0 %744
        %v747 = vmul.f32 %v518, %v741
        %v748 = vmul.f32 %v520, %v745
        %749 = vset.pattern.permute.xlu0 2
        %750 = vperm.xlu0 %749, %v724
        %v751 = vpop.permute.xlu0 %750
        %753 = vset.pattern.permute.xlu0 2
        %754 = vperm.xlu0 %753, %v726
        %v755 = vpop.permute.xlu0 %754
        %v757 = vmul.f32 %v519, %v751
        %v758 = vmul.f32 %v521, %v755
        %759 = vrot.lane.b32.xlu0 %v724, 64
        %v760 = vpop.permute.xlu0 %759
        %761 = vrot.lane.b32.xlu0 %v726, 64
        %v762 = vpop.permute.xlu0 %761
        %v765 = vsel %vm661, %v737, %v747
        %v766 = vsel %vm661, %v738, %v748
        %v767 = vsel %vm661, %v757, %v760
        %v768 = vsel %vm661, %v758, %v762
        %v769 = vpack.c.bf16 %v766, %v765
        %v770 = vpack.c.bf16 %v768, %v767
        %v771 = vld [vmem:[%s6] sm:$0xf]
        %v772 = vld [vmem:[%s6 + $0x4] sm:$0xf]
        %v773 = vld [vmem:[%s6 + $0x8] sm:$0xf]
        %v774 = vld [vmem:[%s6 + $0xc] sm:$0xf]
        %v775 = vld [vmem:[%s6 + $0x10] sm:$0xf]
        %v776 = vld [vmem:[%s6 + $0x14] sm:$0xf]
        %v777 = vld [vmem:[%s6 + $0x18] sm:$0xf]
        %v778 = vld [vmem:[%s6 + $0x1c] sm:$0xf]
        %v779 = vld [vmem:[%s6 + $0x20] sm:$0xf]
        %v780 = vld [vmem:[%s6 + $0x24] sm:$0xf]
        %v781 = vld [vmem:[%s6 + $0x28] sm:$0xf]
        %v782 = vld [vmem:[%s6 + $0x2c] sm:$0xf]
        %v783 = vld [vmem:[%s6 + $0x30] sm:$0xf]
        %v784 = vld [vmem:[%s6 + $0x34] sm:$0xf]
        %v785 = vld [vmem:[%s6 + $0x38] sm:$0xf]
        %v786 = vld [vmem:[%s6 + $0x3c] sm:$0xf]
        %v787 = vld [vmem:[%s6 + $0x40] sm:$0xf]
        %v788 = vld [vmem:[%s6 + $0x44] sm:$0xf]
        %v789 = vld [vmem:[%s6 + $0x48] sm:$0xf]
        %v790 = vld [vmem:[%s6 + $0x4c] sm:$0xf]
        %v791 = vld [vmem:[%s6 + $0x50] sm:$0xf]
        %v792 = vld [vmem:[%s6 + $0x54] sm:$0xf]
        %v793 = vld [vmem:[%s6 + $0x58] sm:$0xf]
        %v794 = vld [vmem:[%s6 + $0x5c] sm:$0xf]
        %v795 = vld [vmem:[%s6 + $0x60] sm:$0x3]
        %v821 = vunpack.c.l.b16 %v771
        %v822 = vunpack.c.l.b16 %v772
        %v823 = vunpack.c.l.b16 %v773
        %v824 = vunpack.c.l.b16 %v774
        %v825 = vunpack.c.l.b16 %v775
        %v826 = vunpack.c.l.b16 %v776
        %v827 = vunpack.c.l.b16 %v777
        %v828 = vunpack.c.l.b16 %v778
        %v829 = vunpack.c.l.b16 %v779
        %v830 = vunpack.c.l.b16 %v780
        %v831 = vunpack.c.l.b16 %v781
        %v832 = vunpack.c.l.b16 %v782
        %v833 = vunpack.c.l.b16 %v783
        %v834 = vunpack.c.l.b16 %v784
        %v835 = vunpack.c.l.b16 %v785
        %v836 = vunpack.c.l.b16 %v786
        %v837 = vunpack.c.l.b16 %v787
        %v838 = vunpack.c.l.b16 %v788
        %v839 = vunpack.c.l.b16 %v789
        %v840 = vunpack.c.l.b16 %v790
        %v841 = vunpack.c.l.b16 %v791
        %v842 = vunpack.c.l.b16 %v792
        %v843 = vunpack.c.l.b16 %v793
        %v844 = vunpack.c.l.b16 %v794
        %v845 = vunpack.c.l.b16 %v795
        %v846 = vpack.c.b16 %v822, %v821
        %v847 = vpack.c.b16 %v824, %v823
        %v848 = vpack.c.b16 %v826, %v825
        %v849 = vpack.c.b16 %v828, %v827
        %v850 = vpack.c.b16 %v830, %v829
        %v851 = vpack.c.b16 %v832, %v831
        %v852 = vpack.c.b16 %v834, %v833
        %v853 = vpack.c.b16 %v836, %v835
        %v854 = vpack.c.b16 %v838, %v837
        %v855 = vpack.c.b16 %v840, %v839
        %v856 = vpack.c.b16 %v842, %v841
        %v857 = vpack.c.b16 %v844, %v843
        %v858 = vpack.c.b16 %v845, %v845
        %vm871 = vcmask 547840
        %v873 = vsel %vm871, %v770, 0
        %vm875 = vcmask 1040384
        %vm876 = vcmask 1041408
        %v877 = vsel %vm875, 4294967295, 65535
        %v878 = vsel %vm876, %v877, 0
        %v880 = vand.u32 %v858, %v878
        %882 = vmatprep.subr.bf16.mxu0 0
        %883 = vmatpush1.bf16.msra.mxu0 %v853
        %884 = vmatprep.subr.bf16.mxu0 0
        %885 = vmatpush1.bf16.msra.mxu0 %v852
        %886 = vmatprep.subr.bf16.mxu0 0
        %887 = vmatpush1.bf16.msra.mxu0 %v851
        %888 = vmatprep.subr.bf16.mxu0 0
        %889 = vmatpush1.bf16.msra.mxu0 %v850
        %890 = vmatprep.subr.bf16.mxu0 0
        %891 = vmatpush1.bf16.msra.mxu0 %v849
        %892 = vmatprep.subr.bf16.mxu0 0
        %893 = vmatpush1.bf16.msra.mxu0 %v848
        %894 = vmatprep.subr.bf16.mxu0 0
        %895 = vmatpush1.bf16.msra.mxu0 %v847
        %896 = vmatprep.subr.bf16.mxu0 0
        %897 = vmatpush1.bf16.msra.mxu0 %v846
        %898 = vmatprep.subr.bf16.mxu0 0
        %899 = vmatpush2.bf16.msra.mxu0 0
        %900 = vmatprep.subr.bf16.mxu0 0
        %901 = vmatpush2.bf16.msra.mxu0 0
        %902 = vmatprep.subr.bf16.mxu0 0
        %903 = vmatpush2.bf16.msra.mxu0 0
        %904 = vmatprep.subr.bf16.mxu0 0
        %905 = vmatpush2.bf16.msra.mxu0 %v880
        %906 = vmatprep.subr.bf16.mxu0 0
        %907 = vmatpush2.bf16.msra.mxu0 %v857
        %908 = vmatprep.subr.bf16.mxu0 0
        %909 = vmatpush2.bf16.msra.mxu0 %v856
        %910 = vmatprep.subr.bf16.mxu0 0
        %911 = vmatpush2.bf16.msra.mxu0 %v855
        %912 = vmatprep.subr.bf16.mxu0 0
        %913 = vmatpush2.bf16.msra.mxu0 %v854
        %914 = vmatprep.mubr.bf16.mxu0 %v873
        %915 = vmatmul.mubr.bf16.gmra.mxu0 %v769
        %v916 = vpop.f32.mrf.mxu0
        %v917 = vadd.f32 %v416, %v916
        %v918 = vpop.f32.mrf.mxu0
        %v919 = vpop.f32.mrf.mxu0
        %v920 = vadd.f32 %v417, %v919
        %v921 = vpop.f32.mrf.mxu0
        %922 = vdwg.mxu0
        %v923 = vpack.c.bf16 %v920, %v917
        %v924 = vld [vmem:[%s7] sm:$0xf]
        %v925 = vld [vmem:[%s7 + $0x4] sm:$0xf]
        %v926 = vld [vmem:[%s7 + $0x8] sm:$0xf]
        %v927 = vld [vmem:[%s7 + $0xc] sm:$0xf]
        %v932 = vunpack.c.l.b16 %v924
        %v933 = vunpack.c.l.b16 %v925
        %v934 = vunpack.c.l.b16 %v926
        %v935 = vunpack.c.l.b16 %v927
        %v936 = vpack.c.b16 %v933, %v932
        %v937 = vpack.c.b16 %v935, %v934
        %v941 = vsel %vm455, %v923, 0
        %943 = vmatprep.subr.bf16.mxu0 0
        %944 = vmatpush1.bf16.msra.mxu0 0
        %945 = vmatprep.subr.bf16.mxu0 0
        %946 = vmatpush1.bf16.msra.mxu0 0
        %947 = vmatprep.subr.bf16.mxu0 0
        %948 = vmatpush1.bf16.msra.mxu0 0
        %949 = vmatprep.subr.bf16.mxu0 0
        %950 = vmatpush1.bf16.msra.mxu0 0
        %951 = vmatprep.subr.bf16.mxu0 0
        %952 = vmatpush1.bf16.msra.mxu0 0
        %953 = vmatprep.subr.bf16.mxu0 0
        %954 = vmatpush1.bf16.msra.mxu0 0
        %955 = vmatprep.subr.bf16.mxu0 0
        %956 = vmatpush1.bf16.msra.mxu0 %v937
        %957 = vmatprep.subr.bf16.mxu0 0
        %958 = vmatpush1.bf16.msra.mxu0 %v936
        %959 = vmatprep.subr.bf16.mxu0 0
        %960 = vmatpush2.bf16.msra.mxu0 0
        %961 = vmatprep.subr.bf16.mxu0 0
        %962 = vmatpush2.bf16.msra.mxu0 0
        %963 = vmatprep.subr.bf16.mxu0 0
        %964 = vmatpush2.bf16.msra.mxu0 0
        %965 = vmatprep.subr.bf16.mxu0 0
        %966 = vmatpush2.bf16.msra.mxu0 0
        %967 = vmatprep.subr.bf16.mxu0 0
        %968 = vmatpush2.bf16.msra.mxu0 0
        %969 = vmatprep.subr.bf16.mxu0 0
        %970 = vmatpush2.bf16.msra.mxu0 0
        %971 = vmatprep.subr.bf16.mxu0 0
        %972 = vmatpush2.bf16.msra.mxu0 0
        %973 = vmatprep.subr.bf16.mxu0 0
        %974 = vmatpush2.bf16.msra.mxu0 0
        %975 = vmatprep.mubr.bf16.mxu0 0
        %976 = vmatmul.mubr.bf16.gmra.mxu0 %v941
        %v977 = vpop.f32.mrf.mxu0
        %v978 = vadd.f32 0.0, %v977
        %v979 = vpop.f32.mrf.mxu0
        %v980 = vpop.f32.mrf.mxu0
        %v981 = vadd.f32 0.0, %v980
        %v982 = vpop.f32.mrf.mxu0
        %983 = vdwg.mxu0
        %v984 = vpack.c.bf16 %v981, %v978
        %v985 = vld [vmem:[%s8] sm:$0xf]
        %v986 = vld [vmem:[%s8 + $0x4] sm:$0xf]
        %v987 = vld [vmem:[%s8 + $0x8] sm:$0xf]
        %v988 = vld [vmem:[%s8 + $0xc] sm:$0xf]
        %v989 = vld [vmem:[%s9] sm:$0x1]
        %v991 = vlaneseq
        %v992 = vshrl.u32 %v991, 7
        %v993 = vsub.s32 0, %v992
        %v994 = vrot.slane %v989, %v993
        %v1000 = vunpack.c.l.b16 %v985
        %v1001 = vunpack.c.l.b16 %v986
        %v1002 = vunpack.c.l.b16 %v987
        %v1003 = vunpack.c.l.b16 %v988
        %v1004 = vpack.c.b16 %v1001, %v1000
        %v1005 = vpack.c.b16 %v1003, %v1002
        %v1009 = vsel %vm455, %v984, 0
        %1011 = vmatprep.subr.bf16.mxu0 0
        %1012 = vmatpush1.bf16.msra.mxu0 0
        %1013 = vmatprep.subr.bf16.mxu0 0
        %1014 = vmatpush1.bf16.msra.mxu0 0
        %1015 = vmatprep.subr.bf16.mxu0 0
        %1016 = vmatpush1.bf16.msra.mxu0 0
        %1017 = vmatprep.subr.bf16.mxu0 0
        %1018 = vmatpush1.bf16.msra.mxu0 0
        %1019 = vmatprep.subr.bf16.mxu0 0
        %1020 = vmatpush1.bf16.msra.mxu0 0
        %1021 = vmatprep.subr.bf16.mxu0 0
        %1022 = vmatpush1.bf16.msra.mxu0 0
        %1023 = vmatprep.subr.bf16.mxu0 0
        %1024 = vmatpush1.bf16.msra.mxu0 %v1005
        %1025 = vmatprep.subr.bf16.mxu0 0
        %1026 = vmatpush1.bf16.msra.mxu0 %v1004
        %1027 = vmatprep.subr.bf16.mxu0 0
        %1028 = vmatpush2.bf16.msra.mxu0 0
        %1029 = vmatprep.subr.bf16.mxu0 0
        %1030 = vmatpush2.bf16.msra.mxu0 0
        %1031 = vmatprep.subr.bf16.mxu0 0
        %1032 = vmatpush2.bf16.msra.mxu0 0
        %1033 = vmatprep.subr.bf16.mxu0 0
        %1034 = vmatpush2.bf16.msra.mxu0 0
        %1035 = vmatprep.subr.bf16.mxu0 0
        %1036 = vmatpush2.bf16.msra.mxu0 0
        %1037 = vmatprep.subr.bf16.mxu0 0
        %1038 = vmatpush2.bf16.msra.mxu0 0
        %1039 = vmatprep.subr.bf16.mxu0 0
        %1040 = vmatpush2.bf16.msra.mxu0 0
        %1041 = vmatprep.subr.bf16.mxu0 0
        %1042 = vmatpush2.bf16.msra.mxu0 0
        %1043 = vmatprep.mubr.bf16.mxu0 0
        %1044 = vmatmul.mubr.bf16.gmra.mxu0 %v1009
        %v1045 = vpop.f32.mrf.mxu0
        %v1046 = vadd.f32 %v994, %v1045
        %v1047 = vpop.f32.mrf.mxu0
        %v1048 = vpop.f32.mrf.mxu0
        %v1049 = vadd.f32 %v994, %v1048
        %v1050 = vpop.f32.mrf.mxu0
        %1051 = vdwg.mxu0
        %v1052 = vmul.f32 %v1046, 0.5
        %v1053 = vmul.f32 %v1049, 0.5
        %v1054 = vmul.f32 %v1046, 0.70710677
        %v1055 = vmul.f32 %v1049, 0.70710677
        %v1056 = verf.f32.pop %v1054
        %v1057 = verf.f32.pop %v1055
        %v1058 = vadd.f32 %v1056, 1.0
        %v1059 = vadd.f32 %v1057, 1.0
        %v1060 = vmul.f32 %v1052, %v1058
        %v1061 = vmul.f32 %v1053, %v1059
        %v1062 = vpack.c.bf16 %v1061, %v1060
        %v1063 = vld [vmem:[%s10] sm:$0xf]
        %v1064 = vld [vmem:[%s10 + $0x4] sm:$0xf]
        %v1065 = vld [vmem:[%s10 + $0x8] sm:$0xf]
        %v1066 = vld [vmem:[%s10 + $0xc] sm:$0xf]
        %v1067 = vld [vmem:[%s10 + $0x10] sm:$0xf]
        %v1068 = vld [vmem:[%s10 + $0x14] sm:$0xf]
        %v1069 = vld [vmem:[%s10 + $0x18] sm:$0xf]
        %v1070 = vld [vmem:[%s10 + $0x1c] sm:$0xf]
        %v1071 = vld [vmem:[%s11] sm:$0x1]
        %v1073 = vlaneseq
        %v1074 = vshrl.u32 %v1073, 7
        %v1075 = vsub.s32 0, %v1074
        %v1076 = vrot.slane %v1071, %v1075
        %v1086 = vunpack.c.l.b16 %v1063
        %v1087 = vunpack.c.l.b16 %v1064
        %v1088 = vunpack.c.l.b16 %v1065
        %v1089 = vunpack.c.l.b16 %v1066
        %v1090 = vunpack.c.l.b16 %v1067
        %v1091 = vunpack.c.l.b16 %v1068
        %v1092 = vunpack.c.l.b16 %v1069
        %v1093 = vunpack.c.l.b16 %v1070
        %v1094 = vpack.c.b16 %v1087, %v1086
        %v1095 = vpack.c.b16 %v1089, %v1088
        %v1096 = vpack.c.b16 %v1091, %v1090
        %v1097 = vpack.c.b16 %v1093, %v1092
        %v1103 = vsel %vm661, %v1062, 0
        %1105 = vmatprep.subr.bf16.mxu0 0
        %1106 = vmatpush1.bf16.msra.mxu0 0
        %1107 = vmatprep.subr.bf16.mxu0 0
        %1108 = vmatpush1.bf16.msra.mxu0 0
        %1109 = vmatprep.subr.bf16.mxu0 0
        %1110 = vmatpush1.bf16.msra.mxu0 0
        %1111 = vmatprep.subr.bf16.mxu0 0
        %1112 = vmatpush1.bf16.msra.mxu0 0
        %1113 = vmatprep.subr.bf16.mxu0 0
        %1114 = vmatpush1.bf16.msra.mxu0 %v1097
        %1115 = vmatprep.subr.bf16.mxu0 0
        %1116 = vmatpush1.bf16.msra.mxu0 %v1096
        %1117 = vmatprep.subr.bf16.mxu0 0
        %1118 = vmatpush1.bf16.msra.mxu0 %v1095
        %1119 = vmatprep.subr.bf16.mxu0 0
        %1120 = vmatpush1.bf16.msra.mxu0 %v1094
        %1121 = vmatprep.subr.bf16.mxu0 0
        %1122 = vmatpush2.bf16.msra.mxu0 0
        %1123 = vmatprep.subr.bf16.mxu0 0
        %1124 = vmatpush2.bf16.msra.mxu0 0
        %1125 = vmatprep.subr.bf16.mxu0 0
        %1126 = vmatpush2.bf16.msra.mxu0 0
        %1127 = vmatprep.subr.bf16.mxu0 0
        %1128 = vmatpush2.bf16.msra.mxu0 0
        %1129 = vmatprep.subr.bf16.mxu0 0
        %1130 = vmatpush2.bf16.msra.mxu0 0
        %1131 = vmatprep.subr.bf16.mxu0 0
        %1132 = vmatpush2.bf16.msra.mxu0 0
        %1133 = vmatprep.subr.bf16.mxu0 0
        %1134 = vmatpush2.bf16.msra.mxu0 0
        %1135 = vmatprep.subr.bf16.mxu0 0
        %1136 = vmatpush2.bf16.msra.mxu0 0
        %1137 = vmatprep.mubr.bf16.mxu0 0
        %1138 = vmatmul.mubr.bf16.gmra.mxu0 %v1103
        %v1139 = vpop.f32.mrf.mxu0
        %v1140 = vadd.f32 %v1076, %v1139
        %v1141 = vpop.f32.mrf.mxu0
        %v1142 = vpop.f32.mrf.mxu0
        %v1143 = vadd.f32 %v1076, %v1142
        %v1144 = vpop.f32.mrf.mxu0
        %1145 = vdwg.mxu0
        %v1146 = vpack.c.bf16 %v1143, %v1140
        %v1148 = vunpack.c.l.b16 %v1146
        %v1149 = vunpack.c.h.b16 %v1146
        %v1150 = vpack.c.b16 %v1148, %v1148
        %v1151 = vpack.c.b16 %v1149, %v1149
        %vm1154 = vcmask 257024
        %1155 = vst.msk [vmem:[%s407] sm:$0xf] %vm1154, %v1150
        %1156 = vst.msk [vmem:[%s407 + $0x4] sm:$0xf] %vm1154, %v1151
        %s1157 = sand.u32 %s291, 1
        %s1158 = scalar_lea.sflag [#allocation3], %s1157
        %s1159 = sand.u32 %s291, 1
        %s1160 = smul.addr %s1159, 8
        %s1161 = scalar_lea.vmem [#allocation2], %s1160
        // Predicated region
        $region69: #{tpu_custom_call.1} parent=67 // pred_check
          %p1162 = pneg %p301
        $region70: #{tpu_custom_call.1} parent=67 // pred_check_branch
          %1164 = sbr.rel (%p1162) target = $region72
        $region71: #{tpu_custom_call.1} parent=67 // pred_region
          %s1165 = smul.u32 2, %s26
          %s1167 = ssub.s32 128, 128
          %1168 = vsyncadd %s1158, %s1167
          %s1169 = smul.addr %s1165, 64
          %s1170 = scalar_lea.hbm %s12, %s1169
          %s1171 = sshll.u32 %s1161, 4
          %s1172 = int_to_ptr.vmem [resolvable:$true] %s1171
          %1177 = dma.vmem_to_hbm [thread:$0]  %s1172, 128, %s1170, %s1158, 64, 64, 4
        $region72: #{tpu_custom_call.1} parent=67 // pred_fallthru
          _
      $region68: #{tpu_custom_call.1} parent=5 // pred_fallthru
        _
      %p1178 = scmp.le.s32.totalorder 2, %s21
      // Predicated region
      $region73: #{tpu_custom_call.1} parent=5 // pred_check
        %p1179 = pneg %p1178
      $region74: #{tpu_custom_call.1} parent=5 // pred_check_branch
        %1181 = sbr.rel (%p1179) target = $region76
      $region75: #{tpu_custom_call.1} parent=5 // pred_region
        %s1182 = ssub.s32 %s21, 2
        // Predicated region
        $region77: #{tpu_custom_call.1} parent=75 // pred_check
          %p1183 = pneg %p307
        $region78: #{tpu_custom_call.1} parent=75 // pred_check_branch
          %1185 = sbr.rel (%p1183) target = $region80
        $region79: #{tpu_custom_call.1} parent=75 // pred_region
          %s1186 = sand.u32 %s292, 1
          %s1187 = scalar_lea.sflag [#allocation3], %s1186
          %s1188 = sand.u32 %s292, 1
          %s1189 = smul.addr %s1188, 8
          %s1190 = scalar_lea.vmem [#allocation2], %s1189
          %1191 = dma.done %s1187, 128
        $region80: #{tpu_custom_call.1} parent=75 // pred_fallthru
          _
      $region76: #{tpu_custom_call.1} parent=5 // pred_fallthru
        _
    $region6: #{tpu_custom_call.1} parent=1 // loop_footer
      %s25 = sadd.s32 1, %s21
    $region7: #{tpu_custom_call.1} parent=1 // loop_footer_branch
      %20 = sbr.rel target = $region3
    $region8: #{tpu_custom_call.1} parent=1 // loop_exit
      _
    %1192 = vsyncpa [#allocation3], 1
    %s1193 = scalar_lea.sflag [#allocation3], 1
    %1194 = vsyncpa %s1193, 1

</llo_original>
